<compile_context>
chip_gen: v7x
topology: tpu7x:2x2x1
jax: 0.10.0
libtpu: 0.0.40
codegen_flags: <defaults>
</compile_context>

<pallas_src>
import functools

import jax
import jax.numpy as jnp
from jax import lax
from jax.experimental import pallas as pl
from jax.experimental.pallas import tpu as pltpu

# Full-precision f32 matmuls for BOTH the reference and the kernel trace so the
# kernel matches the PyTorch module to f32 rounding (no single-pass bf16 error).
jax.config.update("jax_default_matmul_precision", "highest")


def _soft_dot_attention_kernel(x_ref, ctx_ref, w_x_fused_ref, w_out_c_t_ref,
                               h_ref, attn_ref):
    x = x_ref[...]                                 # (TB, dim) f32
    ctx = ctx_ref[...].astype(jnp.float32)         # (TB, L, dim) streamed f32/bf16
    dim = x.shape[-1]

    # One wide MXU pass for both x-side projections (weights fused in wrapper):
    #   xw[:, :dim] = x @ w_in.T              (attention query "target")
    #   xw[:, dim:] = x @ w_out[:, dim:].T    (input half of linear_out)
    xw = jnp.dot(x, w_x_fused_ref[...],
                 preferred_element_type=jnp.float32,
                 precision=lax.Precision.HIGHEST)
    target = xw[:, :dim]
    x_out = xw[:, dim:]

    # scores[b, l] = <context[b, l, :], target[b, :]>
    # VPU broadcast-multiply + lane reduce (avoids N=1 per-batch MXU matvecs).
    scores = jnp.sum(ctx * target[:, None, :], axis=-1)          # (TB, L) f32

    # softmax over L — exact division (approx reciprocal dropped for parity).
    m = jnp.max(scores, axis=-1, keepdims=True)
    e = jnp.exp(scores - m)
    attn = e / jnp.sum(e, axis=-1, keepdims=True)                # (TB, L)

    # weighted[b, d] = sum_l attn[b, l] * context[b, l, d]
    # VPU broadcast-multiply + sublane reduce (avoids M=1 per-batch matvecs).
    weighted = jnp.sum(attn[:, :, None] * ctx, axis=1)           # (TB, dim)

    # h_tilde = tanh(weighted @ w_out[:, :dim].T + x @ w_out[:, dim:].T)
    h = jnp.dot(weighted, w_out_c_t_ref[...],
                preferred_element_type=jnp.float32,
                precision=lax.Precision.HIGHEST) + x_out
    h_ref[...] = jnp.tanh(h).astype(h_ref.dtype)
    attn_ref[...] = attn.astype(attn_ref.dtype)


def _pick_block_b(B, L, dim, ctx_itemsize, requested=None):
    """Pick a batch tile tb such that:
         * tb divides B and (tb % 8 == 0 or tb == B)  -> legal sublane block,
         * the double-buffered working set fits a VMEM budget safe on
           v5e / v6e (128 MiB) and v7x (64 MiB per TC, 32 MiB scoped default),
       preferring tb % 128 == 0 (full MXU rows, sublane-dense stores) and an
       even grid of >= 2 steps (keeps both v7x TensorCores pipelined).
       `requested` acts as an upper bound on the tile."""
    # Per-batch-row footprint of one step: double-buffered streamed context,
    # f32 upcast/product temporaries, and the x / h / attn tiles.
    per_row = (2 * ctx_itemsize + 8) * L * dim + 8 * (3 * dim + 2 * L)
    weight_bytes = 2 * 4 * (3 * dim * dim)        # fused + ctx-half weights, 2x buffered
    budget = 28 * 1024 * 1024
    avail = max(budget - weight_bytes, 4 * 1024 * 1024)

    target = requested if requested is not None else max(8, avail // per_row)
    target = min(int(target), B)

    cands = sorted({B} | {b for b in range(8, B + 1, 8) if B % b == 0})
    fitting = [b for b in cands if b <= target] or [min(cands)]
    lane_full = [b for b in fitting if b % 128 == 0]
    pool = lane_full or fitting
    even_grid = [b for b in pool if (B // b) >= 2 and (B // b) % 2 == 0]
    return max(even_grid) if even_grid else max(pool)


@functools.partial(jax.jit, static_argnames=("block_b", "context_stream_dtype"))
def soft_dot_attention(x, context, w_in, w_out, *, block_b=None,
                       context_stream_dtype=None):
    """Forward pass of SoftDotAttention.

    x:       (B, dim)      f32
    context: (B, L, dim)   f32
    w_in:    (dim, dim)    PyTorch linear_in.weight  (target = x @ w_in.T)
    w_out:   (dim, 2*dim)  PyTorch linear_out.weight (h = cat([w_ctx, x]) @ w_out.T)
    context_stream_dtype: optional dtype (e.g. jnp.bfloat16) to stream the
        HBM-bound context at half width; accumulation / softmax / tanh stay f32.
        Default None keeps the input dtype for exact parity with PyTorch.
    Returns (h_tilde (B, dim) f32, attn (B, L) f32).
    """
    B, dim = x.shape
    _, L, _ = context.shape

    x = x.astype(jnp.float32)
    if context_stream_dtype is not None:
        context = context.astype(context_stream_dtype)

    # One-time weight prep: hoists the transposes and the lane-axis concat out
    # of the kernel and fuses the two x-side projections into one wide matmul.
    w_in_t = jnp.transpose(w_in).astype(jnp.float32)                 # (dim, dim)
    w_out_c_t = jnp.transpose(w_out[:, :dim]).astype(jnp.float32)    # (dim, dim)
    w_out_x_t = jnp.transpose(w_out[:, dim:]).astype(jnp.float32)    # (dim, dim)
    w_x_fused = jnp.concatenate([w_in_t, w_out_x_t], axis=1)         # (dim, 2*dim)

    ctx_itemsize = jnp.dtype(context.dtype).itemsize
    tb = _pick_block_b(B, L, dim, ctx_itemsize, block_b)
    grid = (B // tb,)

    # Advisory cost estimate for XLA's scheduler around the custom call.
    cost = pl.CostEstimate(
        flops=int(6 * B * dim * dim + 4 * B * L * dim),
        transcendentals=int(B * L + B * dim),
        bytes_accessed=int(ctx_itemsize * B * L * dim
                           + 4 * (2 * B * dim + B * L + 3 * dim * dim)))

    # VMEM limit: double-buffered context + f32 temporaries + weights + margin,
    # clamped to a range safe on v5e / v6e / v7x.
    block_bytes = ((2 * ctx_itemsize + 8) * L * dim + 8 * (3 * dim + 2 * L)) * tb
    weight_bytes = 2 * 4 * (3 * dim * dim)
    vmem_limit = min(64 * 1024 * 1024,
                     max(16 * 1024 * 1024, block_bytes + weight_bytes + (4 << 20)))

    grid_spec = pltpu.PrefetchScalarGridSpec(
        num_scalar_prefetch=0,
        grid=grid,
        in_specs=[
            pl.BlockSpec((tb, dim), lambda i: (i, 0)),           # x        (streamed)
            pl.BlockSpec((tb, L, dim), lambda i: (i, 0, 0)),     # context  (streamed)
            pl.BlockSpec((dim, 2 * dim), lambda i: (0, 0)),      # [w_in.T | w_out_x.T] (resident)
            pl.BlockSpec((dim, dim), lambda i: (0, 0)),          # w_out_c.T            (resident)
        ],
        out_specs=(
            pl.BlockSpec((tb, dim), lambda i: (i, 0)),           # h_tilde
            pl.BlockSpec((tb, L), lambda i: (i, 0)),             # attn
        ),
    )

    return pl.pallas_call(
        _soft_dot_attention_kernel,
        out_shape=(jax.ShapeDtypeStruct((B, dim), jnp.float32),
                   jax.ShapeDtypeStruct((B, L), jnp.float32)),
        grid_spec=grid_spec,
        compiler_params=pltpu.CompilerParams(
            dimension_semantics=("parallel",),
            vmem_limit_bytes=int(vmem_limit)),
        cost_estimate=cost,
    )(x, context, w_x_fused, w_out_c_t)


def _reference(x, context, w_in, w_out):
    target = x @ w_in.T
    scores = jnp.einsum('bld,bd->bl', context, target)
    attn = jax.nn.softmax(scores, axis=-1)
    weighted = jnp.einsum('bl,bld->bd', attn, context)
    h = jnp.concatenate([weighted, x], axis=1)
    return jnp.tanh(h @ w_out.T), attn


if __name__ == "__main__":
    # Small shapes; tb=8 -> 4 grid steps (even, >= 2 steps per v7x TensorCore).
    B, L, dim = 32, 8, 32
    key = jax.random.PRNGKey(0)
    k1, k2, k3, k4 = jax.random.split(key, 4)

    x = jax.random.normal(k1, (B, dim), dtype=jnp.float32)
    context = jax.random.normal(k2, (B, L, dim), dtype=jnp.float32)
    # Deterministic synthetic nn.Linear weights (no bias).
    w_in = jax.random.normal(k3, (dim, dim), dtype=jnp.float32) * 0.1
    w_out = jax.random.normal(k4, (dim, 2 * dim), dtype=jnp.float32) * 0.1

    # 1) Exact path: f32 context streaming, faithful to the PyTorch module.
    h_tilde, attn = soft_dot_attention(x, context, w_in, w_out, block_b=8)
    jax.block_until_ready((h_tilde, attn))
    h_ref, attn_ref = _reference(x, context, w_in, w_out)
    assert jnp.allclose(attn, attn_ref, atol=1e-3, rtol=1e-3), "attn mismatch"
    assert jnp.allclose(h_tilde, h_ref, atol=1e-3, rtol=1e-3), "h_tilde mismatch"

    # 2) bf16-streamed context path (halves the HBM-bound context traffic).
    #    Compared against a reference seeing the same bf16-rounded context.
    h_bf, attn_bf = soft_dot_attention(x, context, w_in, w_out, block_b=8,
                                       context_stream_dtype=jnp.bfloat16)
    jax.block_until_ready((h_bf, attn_bf))
    ctx_rounded = context.astype(jnp.bfloat16).astype(jnp.float32)
    h_ref_bf, attn_ref_bf = _reference(x, ctx_rounded, w_in, w_out)
    assert jnp.allclose(attn_bf, attn_ref_bf, atol=1e-3, rtol=1e-3), "bf16 attn mismatch"
    assert jnp.allclose(h_bf, h_ref_bf, atol=1e-3, rtol=1e-3), "bf16 h_tilde mismatch"

    print("KERNEL_OK")
</pallas_src>

<mosaic_0001>
module attributes {stable_mosaic.version = 11 : i64} {
  func.func @_soft_dot_attention_kernel(%arg0: i32, %arg1: memref<8x32xf32, #tpu.memory_space<vmem>>, %arg2: memref<8x8x32xf32, #tpu.memory_space<vmem>>, %arg3: memref<32x64xf32, #tpu.memory_space<vmem>>, %arg4: memref<32x32xf32, #tpu.memory_space<vmem>>, %arg5: memref<8x32xf32, #tpu.memory_space<vmem>>, %arg6: memref<8x8xf32, #tpu.memory_space<vmem>>) attributes {dimension_semantics = [#tpu.dimension_semantics<parallel>], iteration_bounds = array<i64: 4>, scalar_prefetch = 0 : i64, scratch_operands = 0 : i64, tpu.core_type = #tpu.core_type<tc>, window_params = [{transform_indices = @transform_0, window_bounds = array<i64: 8, 32>}, {transform_indices = @transform_1, window_bounds = array<i64: 8, 8, 32>}, {pipeline_mode = #tpu.pipeline_mode<synchronous>, transform_indices = @transform_2, window_bounds = array<i64: 32, 64>}, {pipeline_mode = #tpu.pipeline_mode<synchronous>, transform_indices = @transform_3, window_bounds = array<i64: 32, 32>}, {transform_indices = @transform_4, window_bounds = array<i64: 8, 32>}, {transform_indices = @transform_5, window_bounds = array<i64: 8, 8>}]} {
    %c0 = arith.constant 0 : index
    %c0_0 = arith.constant 0 : index
    %0 = vector.load %arg1[%c0, %c0_0] : memref<8x32xf32, #tpu.memory_space<vmem>>, vector<8x32xf32>
    %c0_1 = arith.constant 0 : index
    %c0_2 = arith.constant 0 : index
    %c0_3 = arith.constant 0 : index
    %1 = vector.load %arg2[%c0_1, %c0_2, %c0_3] : memref<8x8x32xf32, #tpu.memory_space<vmem>>, vector<8x8x32xf32>
    %c0_4 = arith.constant 0 : index
    %c0_5 = arith.constant 0 : index
    %2 = vector.load %arg3[%c0_4, %c0_5] : memref<32x64xf32, #tpu.memory_space<vmem>>, vector<32x64xf32>
    %cst = arith.constant dense<0.000000e+00> : vector<8x64xf32>
    %3 = tpu.matmul %0, %2, %cst {dimension_numbers = #tpu.dot_dimension_numbers<[1], [0], [0], [1], [0, 0, 1, 1], [], []>, precision = #tpu.contract_precision<fp32>} : vector<8x32xf32>, vector<32x64xf32>, vector<8x64xf32> -> vector<8x64xf32>
    %4 = vector.extract_strided_slice %3 {offsets = [0, 0], sizes = [8, 32], strides = [1, 1]} : vector<8x64xf32> to vector<8x32xf32>
    %5 = vector.extract_strided_slice %3 {offsets = [0, 32], sizes = [8, 32], strides = [1, 1]} : vector<8x64xf32> to vector<8x32xf32>
    %6 = vector.shape_cast %4 : vector<8x32xf32> to vector<8x1x32xf32>
    %7 = vector.broadcast %6 : vector<8x1x32xf32> to vector<8x8x32xf32>
    %8 = arith.mulf %1, %7 : vector<8x8x32xf32>
    %cst_6 = arith.constant dense<0.000000e+00> : vector<8x8xf32>
    %9 = vector.multi_reduction <add>, %8, %cst_6 [2] : vector<8x8x32xf32> to vector<8x8xf32>
    %cst_7 = arith.constant dense<0xFF800000> : vector<8xf32>
    %10 = vector.multi_reduction <maximumf>, %9, %cst_7 [1] : vector<8x8xf32> to vector<8xf32>
    %11 = vector.shape_cast %10 : vector<8xf32> to vector<8x1xf32>
    %12 = vector.broadcast %11 : vector<8x1xf32> to vector<8x8xf32>
    %13 = arith.subf %9, %12 : vector<8x8xf32>
    %14 = math.exp %13 : vector<8x8xf32>
    %cst_8 = arith.constant dense<0.000000e+00> : vector<8xf32>
    %15 = vector.multi_reduction <add>, %14, %cst_8 [1] : vector<8x8xf32> to vector<8xf32>
    %16 = vector.shape_cast %15 : vector<8xf32> to vector<8x1xf32>
    %17 = vector.broadcast %16 : vector<8x1xf32> to vector<8x8xf32>
    %18 = arith.divf %14, %17 : vector<8x8xf32>
    %19 = vector.shape_cast %18 : vector<8x8xf32> to vector<8x8x1xf32>
    %20 = vector.broadcast %19 : vector<8x8x1xf32> to vector<8x8x32xf32>
    %21 = arith.mulf %20, %1 : vector<8x8x32xf32>
    %cst_9 = arith.constant dense<0.000000e+00> : vector<8x32xf32>
    %22 = vector.multi_reduction <add>, %21, %cst_9 [1] : vector<8x8x32xf32> to vector<8x32xf32>
    %c0_10 = arith.constant 0 : index
    %c0_11 = arith.constant 0 : index
    %23 = vector.load %arg4[%c0_10, %c0_11] : memref<32x32xf32, #tpu.memory_space<vmem>>, vector<32x32xf32>
    %cst_12 = arith.constant dense<0.000000e+00> : vector<8x32xf32>
    %24 = tpu.matmul %22, %23, %cst_12 {dimension_numbers = #tpu.dot_dimension_numbers<[1], [0], [0], [1], [0, 0, 1, 1], [], []>, precision = #tpu.contract_precision<fp32>} : vector<8x32xf32>, vector<32x32xf32>, vector<8x32xf32> -> vector<8x32xf32>
    %25 = arith.addf %24, %5 : vector<8x32xf32>
    %26 = math.tanh %25 : vector<8x32xf32>
    %c0_13 = arith.constant 0 : index
    %c0_14 = arith.constant 0 : index
    %27 = vector.load %arg5[%c0_13, %c0_14] : memref<8x32xf32, #tpu.memory_space<vmem>>, vector<8x32xf32>
    tpu.vector_store %arg5[%c0_13, %c0_14], %26 {strides = array<i32>} : memref<8x32xf32, #tpu.memory_space<vmem>>, vector<8x32xf32>,
    %c0_15 = arith.constant 0 : index
    %c0_16 = arith.constant 0 : index
    %28 = vector.load %arg6[%c0_15, %c0_16] : memref<8x8xf32, #tpu.memory_space<vmem>>, vector<8x8xf32>
    tpu.vector_store %arg6[%c0_15, %c0_16], %18 {strides = array<i32>} : memref<8x8xf32, #tpu.memory_space<vmem>>, vector<8x8xf32>,
    return
  }
  func.func @transform_0(%arg0: i32) -> (i32, i32) {
    %c0_i32 = arith.constant 0 : i32
    %c0_i32_0 = arith.constant 0 : i32
    return %arg0, %c0_i32 : i32, i32
  }
  func.func @transform_1(%arg0: i32) -> (i32, i32, i32) {
    %c0_i32 = arith.constant 0 : i32
    %c0_i32_0 = arith.constant 0 : i32
    %c0_i32_1 = arith.constant 0 : i32
    return %arg0, %c0_i32, %c0_i32_0 : i32, i32, i32
  }
  func.func @transform_2(%arg0: i32) -> (i32, i32) {
    %c0_i32 = arith.constant 0 : i32
    %c0_i32_0 = arith.constant 0 : i32
    %c0_i32_1 = arith.constant 0 : i32
    return %c0_i32, %c0_i32_0 : i32, i32
  }
  func.func @transform_3(%arg0: i32) -> (i32, i32) {
    %c0_i32 = arith.constant 0 : i32
    %c0_i32_0 = arith.constant 0 : i32
    %c0_i32_1 = arith.constant 0 : i32
    return %c0_i32, %c0_i32_0 : i32, i32
  }
  func.func @transform_4(%arg0: i32) -> (i32, i32) {
    %c0_i32 = arith.constant 0 : i32
    %c0_i32_0 = arith.constant 0 : i32
    return %arg0, %c0_i32 : i32, i32
  }
  func.func @transform_5(%arg0: i32) -> (i32, i32) {
    %c0_i32 = arith.constant 0 : i32
    %c0_i32_0 = arith.constant 0 : i32
    return %arg0, %c0_i32 : i32, i32
  }
}

</mosaic_0001>

<llo_original>
// kernel: soft_dot_attention.1
$region0: #{soft_dot_attention.1}
  #allocation0 [shape = 'u32[]', space=smem, size = 0x4, offset = 0x4, fixed_abs, tag = 'smem constant byte address 0x4 - core index']
  #allocation1 [shape = 'u32[144,128]{1,0:T(1,128)}', space=vmem, size = 0x12000, scoped, tag = 'internal scratch']
  %s0 = inlined_call_operand.vmem [shape: f32[32,32], index: 0, kind: input, shape index: {}]
  %s1 = inlined_call_operand.vmem [shape: f32[32,8,32], index: 1, kind: input, shape index: {}]
  %s2 = inlined_call_operand.vmem [shape: f32[32,64], index: 2, kind: input, shape index: {}]
  %s3 = inlined_call_operand.vmem [shape: f32[32,32], index: 3, kind: input, shape index: {}]
  %s4 = inlined_call_operand.hbm [shape: f32[32,32], index: 4, kind: output, shape index: {0}]
  %s5 = inlined_call_operand.vmem [shape: f32[32,8], index: 5, kind: output, shape index: {1}]
  %6 = xla_tuple %s4, %s5
  %s7 = sld [smem:[#allocation0]]
  $region57: #{soft_dot_attention.1} parent=0
    _
  %s9 = ssub.s32 1, %s7
  %s10 = scalar_select 0, %s9, %s7
  $region1: #{soft_dot_attention.1} parent=0
    #allocation2 [shape = 'u8[8192]{0}', space=vmem, size = 0x2000, scoped, tag = 'output window, operand 0']
    #allocation3 [shape = 's32[2]{0}', space=sflag, size = 0x8, scoped, tag = 'scoped memory for soft_dot_attention.1']
    %11 = vsyncpa [#allocation3], 0
    %s12 = scalar_lea.sflag [#allocation3], 1
    %13 = vsyncpa %s12, 0
    loop: start=0, step=1, limit=6
    $region2: #{soft_dot_attention.1} parent=1 // loop_pre_header
      _
    $region3: #{soft_dot_attention.1} parent=1 // loop_header
      %s15 = sphi 0, %s19
      %p16 = scmp.ge.s32.totalorder %s15, 6
      %s25 = sphi 0, %s27
      %s28 = sphi 0, %s25
      %s29 = sphi 0, %s28
      %s45 = sphi 0, %s29
      %s51 = sphi 0, %s53
      %s54 = sphi 0, %s51
      %s55 = sphi 0, %s54
      %s71 = sphi 0, %s55
      %s75 = sphi 0, %s75
      %s77 = sphi 0, %s75
      %s78 = sphi 0, %s77
      %s92 = sphi 0, %s78
      %s96 = sphi 0, %s96
      %s98 = sphi 0, %s96
      %s99 = sphi 0, %s98
      %s113 = sphi 0, %s99
      %s119 = sphi 0, %s121
      %s122 = sphi 0, %s119
      %s123 = sphi 0, %s122
      %s139 = sphi 0, %s123
      %s145 = sphi 0, %s147
      %s148 = sphi 0, %s145
      %s149 = sphi 0, %s148
      %s165 = sphi 0, %s149
    $region4: #{soft_dot_attention.1} parent=1 // loop_header_branch
      %18 = sbr.rel (%p16) target = $region8
    $region5: #{soft_dot_attention.1} parent=1 // loop_body
      %s20 = ssub.s32 %s15, 1
      %s21 = ssub.s32 %s15, 2
      %s22 = sadd.s32 %s15, 1
      %s23 = ssub.s32 %s15, %s22
      %p24 = scmp.eq.s32.totalorder %s23, 0
      %s26 = sadd.s32 %s25, 1
      %s27 = scalar_select %p24, %s25, %s26
      %p30 = pneg %p24
      %p31 = scmp.eq.s32.totalorder %s15, 3
      %p32 = por %p30, %p31
      %p33 = scmp.ne.s32.totalorder %s25, %s28
      %p34 = scmp.eq.s32.totalorder %s15, 0
      %p35 = por %p33, %p34
      %p36 = scmp.ne.s32.totalorder %s25, %s28
      %p37 = scmp.eq.s32.totalorder %s20, 3
      %p38 = por %p36, %p37
      %p39 = scmp.ne.s32.totalorder %s28, %s29
      %p40 = scmp.eq.s32.totalorder %s20, 0
      %p41 = por %p39, %p40
      %p42 = scmp.ne.s32.totalorder %s28, %s29
      %p43 = scmp.eq.s32.totalorder %s21, 3
      %p44 = por %p42, %p43
      %p46 = scmp.ne.s32.totalorder %s29, %s45
      %p47 = scmp.eq.s32.totalorder %s21, 0
      %p48 = por %p46, %p47
      %s49 = ssub.s32 %s15, %s22
      %p50 = scmp.eq.s32.totalorder %s49, 0
      %s52 = sadd.s32 %s51, 1
      %s53 = scalar_select %p50, %s51, %s52
      %p56 = pneg %p50
      %p57 = scmp.eq.s32.totalorder %s15, 3
      %p58 = por %p56, %p57
      %p59 = scmp.ne.s32.totalorder %s51, %s54
      %p60 = scmp.eq.s32.totalorder %s15, 0
      %p61 = por %p59, %p60
      %p62 = scmp.ne.s32.totalorder %s51, %s54
      %p63 = scmp.eq.s32.totalorder %s20, 3
      %p64 = por %p62, %p63
      %p65 = scmp.ne.s32.totalorder %s54, %s55
      %p66 = scmp.eq.s32.totalorder %s20, 0
      %p67 = por %p65, %p66
      %p68 = scmp.ne.s32.totalorder %s54, %s55
      %p69 = scmp.eq.s32.totalorder %s21, 3
      %p70 = por %p68, %p69
      %p72 = scmp.ne.s32.totalorder %s55, %s71
      %p73 = scmp.eq.s32.totalorder %s21, 0
      %p74 = por %p72, %p73
      %s76 = sadd.s32 %s75, 1
      %p79 = scmp.eq.s32.totalorder %s15, 3
      %p80 = scmp.ne.s32.totalorder %s75, %s77
      %p81 = scmp.eq.s32.totalorder %s15, 0
      %p82 = por %p80, %p81
      %p83 = scmp.ne.s32.totalorder %s75, %s77
      %p84 = scmp.eq.s32.totalorder %s20, 3
      %p85 = por %p83, %p84
      %p86 = scmp.ne.s32.totalorder %s77, %s78
      %p87 = scmp.eq.s32.totalorder %s20, 0
      %p88 = por %p86, %p87
      %p89 = scmp.ne.s32.totalorder %s77, %s78
      %p90 = scmp.eq.s32.totalorder %s21, 3
      %p91 = por %p89, %p90
      %p93 = scmp.ne.s32.totalorder %s78, %s92
      %p94 = scmp.eq.s32.totalorder %s21, 0
      %p95 = por %p93, %p94
      %s97 = sadd.s32 %s96, 1
      %p100 = scmp.eq.s32.totalorder %s15, 3
      %p101 = scmp.ne.s32.totalorder %s96, %s98
      %p102 = scmp.eq.s32.totalorder %s15, 0
      %p103 = por %p101, %p102
      %p104 = scmp.ne.s32.totalorder %s96, %s98
      %p105 = scmp.eq.s32.totalorder %s20, 3
      %p106 = por %p104, %p105
      %p107 = scmp.ne.s32.totalorder %s98, %s99
      %p108 = scmp.eq.s32.totalorder %s20, 0
      %p109 = por %p107, %p108
      %p110 = scmp.ne.s32.totalorder %s98, %s99
      %p111 = scmp.eq.s32.totalorder %s21, 3
      %p112 = por %p110, %p111
      %p114 = scmp.ne.s32.totalorder %s99, %s113
      %p115 = scmp.eq.s32.totalorder %s21, 0
      %p116 = por %p114, %p115
      %s117 = ssub.s32 %s15, %s22
      %p118 = scmp.eq.s32.totalorder %s117, 0
      %s120 = sadd.s32 %s119, 1
      %s121 = scalar_select %p118, %s119, %s120
      %p124 = pneg %p118
      %p125 = scmp.eq.s32.totalorder %s15, 3
      %p126 = por %p124, %p125
      %p127 = scmp.ne.s32.totalorder %s119, %s122
      %p128 = scmp.eq.s32.totalorder %s15, 0
      %p129 = por %p127, %p128
      %p130 = scmp.ne.s32.totalorder %s119, %s122
      %p131 = scmp.eq.s32.totalorder %s20, 3
      %p132 = por %p130, %p131
      %p133 = scmp.ne.s32.totalorder %s122, %s123
      %p134 = scmp.eq.s32.totalorder %s20, 0
      %p135 = por %p133, %p134
      %p136 = scmp.ne.s32.totalorder %s122, %s123
      %p137 = scmp.eq.s32.totalorder %s21, 3
      %p138 = por %p136, %p137
      %p140 = scmp.ne.s32.totalorder %s123, %s139
      %p141 = scmp.eq.s32.totalorder %s21, 0
      %p142 = por %p140, %p141
      %s143 = ssub.s32 %s15, %s22
      %p144 = scmp.eq.s32.totalorder %s143, 0
      %s146 = sadd.s32 %s145, 1
      %s147 = scalar_select %p144, %s145, %s146
      %p150 = pneg %p144
      %p151 = scmp.eq.s32.totalorder %s15, 3
      %p152 = por %p150, %p151
      %p153 = scmp.ne.s32.totalorder %s145, %s148
      %p154 = scmp.eq.s32.totalorder %s15, 0
      %p155 = por %p153, %p154
      %p156 = scmp.ne.s32.totalorder %s145, %s148
      %p157 = scmp.eq.s32.totalorder %s20, 3
      %p158 = por %p156, %p157
      %p159 = scmp.ne.s32.totalorder %s148, %s149
      %p160 = scmp.eq.s32.totalorder %s20, 0
      %p161 = por %p159, %p160
      %p162 = scmp.ne.s32.totalorder %s148, %s149
      %p163 = scmp.eq.s32.totalorder %s21, 3
      %p164 = por %p162, %p163
      %p166 = scmp.ne.s32.totalorder %s149, %s165
      %p167 = scmp.eq.s32.totalorder %s21, 0
      %p168 = por %p166, %p167
      %p169 = scmp.le.s32.totalorder 1, %s15
      %p170 = scmp.lt.s32.totalorder %s15, 5
      %p171 = pnand %p169, %p170
      %p172 = pneg %p171
      // Predicated region
      $region9: #{soft_dot_attention.1} parent=5 // pred_check
        _
      $region10: #{soft_dot_attention.1} parent=5 // pred_check_branch
        %174 = sbr.rel (%p171) target = $region12
      $region11: #{soft_dot_attention.1} parent=5 // pred_region
        %s175 = ssub.s32 %s15, 1
        // Predicated region
        $region13: #{soft_dot_attention.1} parent=11 // pred_check
          %p176 = pneg %p88
        $region14: #{soft_dot_attention.1} parent=11 // pred_check_branch
          %178 = sbr.rel (%p176) target = $region16
        $region15: #{soft_dot_attention.1} parent=11 // pred_region
          _
        $region16: #{soft_dot_attention.1} parent=11 // pred_fallthru
          _
        // Predicated region
        $region17: #{soft_dot_attention.1} parent=11 // pred_check
          %p179 = pneg %p109
        $region18: #{soft_dot_attention.1} parent=11 // pred_check_branch
          %181 = sbr.rel (%p179) target = $region20
        $region19: #{soft_dot_attention.1} parent=11 // pred_region
          _
        $region20: #{soft_dot_attention.1} parent=11 // pred_fallthru
          _
      $region12: #{soft_dot_attention.1} parent=5 // pred_fallthru
        _
      %p182 = scmp.lt.s32.totalorder %s15, 4
      // Predicated region
      $region21: #{soft_dot_attention.1} parent=5 // pred_check
        %p183 = pneg %p182
      $region22: #{soft_dot_attention.1} parent=5 // pred_check_branch
        %185 = sbr.rel (%p183) target = $region24
      $region23: #{soft_dot_attention.1} parent=5 // pred_region
        // Predicated region
        $region25: #{soft_dot_attention.1} parent=23 // pred_check
          %p186 = pneg %p35
        $region26: #{soft_dot_attention.1} parent=23 // pred_check_branch
          %188 = sbr.rel (%p186) target = $region28
        $region27: #{soft_dot_attention.1} parent=23 // pred_region
          %p189 = scmp.lt.s32.totalorder %s15, 3
          %s190 = scalar_select %p189, %s15, 3
          %s191 = smul.addr %s190, 8
          %s192 = scalar_lea.vmem %s0, %s191
        $region28: #{soft_dot_attention.1} parent=23 // pred_fallthru
          _
        // Predicated region
        $region29: #{soft_dot_attention.1} parent=23 // pred_check
          %p193 = pneg %p61
        $region30: #{soft_dot_attention.1} parent=23 // pred_check_branch
          %195 = sbr.rel (%p193) target = $region32
        $region31: #{soft_dot_attention.1} parent=23 // pred_region
          %s196 = smul.u32 8, %s15
          %p197 = scmp.lt.s32.totalorder %s196, 31
          %s198 = scalar_select %p197, %s196, 31
          %s199 = smul.addr %s198, 8
          %s200 = scalar_lea.vmem %s1, %s199
          %s201 = smul.u32 8, %s15
        $region32: #{soft_dot_attention.1} parent=23 // pred_fallthru
          _
      $region24: #{soft_dot_attention.1} parent=5 // pred_fallthru
        _
      %p202 = scmp.le.s32.totalorder 1, %s15
      %p203 = scmp.lt.s32.totalorder %s15, 5
      %p204 = pnand %p202, %p203
      %p205 = pneg %p204
      // Predicated region
      $region33: #{soft_dot_attention.1} parent=5 // pred_check
        _
      $region34: #{soft_dot_attention.1} parent=5 // pred_check_branch
        %207 = sbr.rel (%p204) target = $region36
      $region35: #{soft_dot_attention.1} parent=5 // pred_region
        %s208 = ssub.s32 %s15, 1
        %p209 = scmp.lt.s32.totalorder %s20, 3
        %s210 = scalar_select %p209, %s20, 3
        %s211 = smul.addr %s210, 8
        %s212 = scalar_lea.vmem %s0, %s211
        %p213 = pneg %p41
        %p214 = pneg %p38
        %s215 = smul.u32 8, %s20
        %p216 = scmp.lt.s32.totalorder %s215, 31
        %s217 = scalar_select %p216, %s215, 31
        %s218 = smul.addr %s217, 8
        %s219 = scalar_lea.vmem %s1, %s218
        %p220 = pneg %p67
        %p221 = pneg %p64
        %p222 = pneg %p88
        %p223 = pneg %p85
        %p224 = pneg %p109
        %p225 = pneg %p106
        %p226 = pneg %p135
        %p227 = pneg %p132
        %s228 = sand.u32 %s122, 1
        %s229 = scalar_lea.sflag [#allocation3], %s228
        %s230 = sand.u32 %s122, 1
        %s231 = smul.addr %s230, 8
        %s232 = scalar_lea.vmem [#allocation2], %s231
        %p233 = pneg %p161
        %p234 = pneg %p158
        %p235 = scmp.lt.s32.totalorder %s20, 3
        %s236 = scalar_select %p235, %s20, 3
        %s237 = smul.addr %s236, 8
        %s238 = scalar_lea.vmem %s5, %s237
        %p239 = scmp.lt.s32.totalorder %s20, 3
        %s240 = scalar_select %p239, %s20, 3
        %s241 = smul.addr %s240, 8
        %s242 = scalar_lea.vmem %s0, %s241
        %s243 = smul.u32 8, %s20
        %p244 = scmp.lt.s32.totalorder %s243, 31
        %s245 = scalar_select %p244, %s243, 31
        %s246 = smul.addr %s245, 8
        %s247 = scalar_lea.vmem %s1, %s246
        %s248 = smul.u32 8, %s20
        %p249 = scmp.lt.s32.totalorder %s20, 3
        %s250 = scalar_select %p249, %s20, 3
        %s251 = smul.addr %s250, 8
        %s252 = scalar_lea.vmem %s5, %s251
        %v253 = vld [vmem:[%s242] sm:$0xff]
        %v254 = vld [vmem:[%s247] sm:$0xff]
        %v255 = vld [vmem:[%s247 + $0x8] sm:$0xff]
        %v256 = vld [vmem:[%s247 + $0x10] sm:$0xff]
        %v257 = vld [vmem:[%s247 + $0x18] sm:$0xff]
        %v258 = vld [vmem:[%s247 + $0x20] sm:$0xff]
        %v259 = vld [vmem:[%s247 + $0x28] sm:$0xff]
        %v260 = vld [vmem:[%s247 + $0x30] sm:$0xff]
        %v261 = vld [vmem:[%s247 + $0x38] sm:$0xff]
        %v262 = vld [vmem:[%s2] sm:$0xff]
        %v263 = vld [vmem:[%s2 + $0x8] sm:$0xff]
        %v264 = vld [vmem:[%s2 + $0x10] sm:$0xff]
        %v265 = vld [vmem:[%s2 + $0x18] sm:$0xff]
        %vm266 = vcmask 261120
        %v268 = vsel %vm266, %v253, 0
        %270 = vmatprep.subr.mxu0 0.0
        %v271 = vand.u32 %v262, 4294901760
        %272 = vmatpush1.msra.mxu0 %v271
        %273 = vmatprep.subr.mxu0 0.0
        %v274 = vand.u32 %v263, 4294901760
        %275 = vmatpush1.msra.mxu0 %v274
        %276 = vmatprep.subr.mxu0 0.0
        %v277 = vand.u32 %v264, 4294901760
        %278 = vmatpush1.msra.mxu0 %v277
        %279 = vmatprep.subr.mxu0 0.0
        %v280 = vand.u32 %v265, 4294901760
        %281 = vmatpush1.msra.mxu0 %v280
        %282 = vmatprep.subr.mxu0 0.0
        %283 = vmatpush1.msra.mxu0 0.0
        %284 = vmatprep.subr.mxu0 0.0
        %285 = vmatpush1.msra.mxu0 0.0
        %286 = vmatprep.subr.mxu0 0.0
        %287 = vmatpush1.msra.mxu0 0.0
        %288 = vmatprep.subr.mxu0 0.0
        %289 = vmatpush1.msra.mxu0 0.0
        %290 = vmatprep.subr.mxu0 0.0
        %291 = vmatpush1.msra.mxu0 0.0
        %292 = vmatprep.subr.mxu0 0.0
        %293 = vmatpush1.msra.mxu0 0.0
        %294 = vmatprep.subr.mxu0 0.0
        %295 = vmatpush1.msra.mxu0 0.0
        %296 = vmatprep.subr.mxu0 0.0
        %297 = vmatpush1.msra.mxu0 0.0
        %298 = vmatprep.subr.mxu0 0.0
        %299 = vmatpush1.msra.mxu0 0.0
        %300 = vmatprep.subr.mxu0 0.0
        %301 = vmatpush1.msra.mxu0 0.0
        %302 = vmatprep.subr.mxu0 0.0
        %303 = vmatpush1.msra.mxu0 0.0
        %304 = vmatprep.subr.mxu0 0.0
        %305 = vmatpush1.msra.mxu0 0.0
        %306 = vmatprep.subr.mxu0 0.0
        %307 = vmatpush1.msra.mxu0 0.0
        %308 = vmatprep.subr.mxu0 0.0
        %309 = vmatpush1.msra.mxu0 0.0
        %310 = vmatprep.subr.mxu0 0.0
        %311 = vmatpush1.msra.mxu0 0.0
        %312 = vmatprep.subr.mxu0 0.0
        %313 = vmatpush1.msra.mxu0 0.0
        %314 = vmatprep.subr.mxu0 0.0
        %315 = vmatpush1.msra.mxu0 0.0
        %316 = vmatprep.subr.mxu0 0.0
        %317 = vmatpush1.msra.mxu0 0.0
        %318 = vmatprep.subr.mxu0 0.0
        %319 = vmatpush1.msra.mxu0 0.0
        %320 = vmatprep.subr.mxu0 0.0
        %321 = vmatpush1.msra.mxu0 0.0
        %322 = vmatprep.subr.mxu0 0.0
        %323 = vmatpush1.msra.mxu0 0.0
        %324 = vmatprep.subr.mxu0 0.0
        %325 = vmatpush1.msra.mxu0 0.0
        %326 = vmatprep.subr.mxu0 0.0
        %327 = vmatpush1.msra.mxu0 0.0
        %328 = vmatprep.subr.mxu0 0.0
        %329 = vmatpush1.msra.mxu0 0.0
        %330 = vmatprep.subr.mxu0 0.0
        %331 = vmatpush1.msra.mxu0 0.0
        %332 = vmatprep.subr.mxu0 0.0
        %333 = vmatpush1.msra.mxu0 0.0
        %334 = vmatprep.subr.mxu0 0.0
        %335 = vmatpush1.msra.mxu0 0.0
        %336 = vmatprep.subr.mxu0 0.0
        %337 = vmatpush1.msra.mxu0 0.0
        %338 = vmatprep.mubr.f32.mxu0 0.0
        %v339 = vand.u32 %v268, 4294901760
        %v340 = vsub.f32 %v268, %v339
        %v341 = vand.u32 %v340, 4294901760
        %v342 = vsub.f32 %v340, %v341
        %v343 = vand.u32 %v342, 4294901760
        %344 = vmatmul.mubr.f32.gmra.mrb[0].mxu0 %v343
        %v345 = vpop.f32.mrb[0].mxu0
        %v346 = vadd.f32 0.0, %v345
        %v347 = vpop.f32.mrb[0].mxu0
        %348 = vdwg.mxu0
        %349 = vmatprep.subr.mxu0 0.0
        %v350 = vand.u32 %v262, 4294901760
        %v351 = vsub.f32 %v262, %v350
        %v352 = vand.u32 %v351, 4294901760
        %v353 = vsub.f32 %v351, %v352
        %v354 = vand.u32 %v353, 4294901760
        %355 = vmatpush1.msra.mxu0 %v354
        %356 = vmatprep.subr.mxu0 0.0
        %v357 = vand.u32 %v263, 4294901760
        %v358 = vsub.f32 %v263, %v357
        %v359 = vand.u32 %v358, 4294901760
        %v360 = vsub.f32 %v358, %v359
        %v361 = vand.u32 %v360, 4294901760
        %362 = vmatpush1.msra.mxu0 %v361
        %363 = vmatprep.subr.mxu0 0.0
        %v364 = vand.u32 %v264, 4294901760
        %v365 = vsub.f32 %v264, %v364
        %v366 = vand.u32 %v365, 4294901760
        %v367 = vsub.f32 %v365, %v366
        %v368 = vand.u32 %v367, 4294901760
        %369 = vmatpush1.msra.mxu0 %v368
        %370 = vmatprep.subr.mxu0 0.0
        %v371 = vand.u32 %v265, 4294901760
        %v372 = vsub.f32 %v265, %v371
        %v373 = vand.u32 %v372, 4294901760
        %v374 = vsub.f32 %v372, %v373
        %v375 = vand.u32 %v374, 4294901760
        %376 = vmatpush1.msra.mxu0 %v375
        %377 = vmatprep.subr.mxu0 0.0
        %378 = vmatpush1.msra.mxu0 0.0
        %379 = vmatprep.subr.mxu0 0.0
        %380 = vmatpush1.msra.mxu0 0.0
        %381 = vmatprep.subr.mxu0 0.0
        %382 = vmatpush1.msra.mxu0 0.0
        %383 = vmatprep.subr.mxu0 0.0
        %384 = vmatpush1.msra.mxu0 0.0
        %385 = vmatprep.subr.mxu0 0.0
        %386 = vmatpush1.msra.mxu0 0.0
        %387 = vmatprep.subr.mxu0 0.0
        %388 = vmatpush1.msra.mxu0 0.0
        %389 = vmatprep.subr.mxu0 0.0
        %390 = vmatpush1.msra.mxu0 0.0
        %391 = vmatprep.subr.mxu0 0.0
        %392 = vmatpush1.msra.mxu0 0.0
        %393 = vmatprep.subr.mxu0 0.0
        %394 = vmatpush1.msra.mxu0 0.0
        %395 = vmatprep.subr.mxu0 0.0
        %396 = vmatpush1.msra.mxu0 0.0
        %397 = vmatprep.subr.mxu0 0.0
        %398 = vmatpush1.msra.mxu0 0.0
        %399 = vmatprep.subr.mxu0 0.0
        %400 = vmatpush1.msra.mxu0 0.0
        %401 = vmatprep.subr.mxu0 0.0
        %402 = vmatpush1.msra.mxu0 0.0
        %403 = vmatprep.subr.mxu0 0.0
        %404 = vmatpush1.msra.mxu0 0.0
        %405 = vmatprep.subr.mxu0 0.0
        %406 = vmatpush1.msra.mxu0 0.0
        %407 = vmatprep.subr.mxu0 0.0
        %408 = vmatpush1.msra.mxu0 0.0
        %409 = vmatprep.subr.mxu0 0.0
        %410 = vmatpush1.msra.mxu0 0.0
        %411 = vmatprep.subr.mxu0 0.0
        %412 = vmatpush1.msra.mxu0 0.0
        %413 = vmatprep.subr.mxu0 0.0
        %414 = vmatpush1.msra.mxu0 0.0
        %415 = vmatprep.subr.mxu0 0.0
        %416 = vmatpush1.msra.mxu0 0.0
        %417 = vmatprep.subr.mxu0 0.0
        %418 = vmatpush1.msra.mxu0 0.0
        %419 = vmatprep.subr.mxu0 0.0
        %420 = vmatpush1.msra.mxu0 0.0
        %421 = vmatprep.subr.mxu0 0.0
        %422 = vmatpush1.msra.mxu0 0.0
        %423 = vmatprep.subr.mxu0 0.0
        %424 = vmatpush1.msra.mxu0 0.0
        %425 = vmatprep.subr.mxu0 0.0
        %426 = vmatpush1.msra.mxu0 0.0
        %427 = vmatprep.subr.mxu0 0.0
        %428 = vmatpush1.msra.mxu0 0.0
        %429 = vmatprep.subr.mxu0 0.0
        %430 = vmatpush1.msra.mxu0 0.0
        %431 = vmatprep.subr.mxu0 0.0
        %432 = vmatpush1.msra.mxu0 0.0
        %433 = vmatprep.mubr.f32.mxu0 0.0
        %v434 = vand.u32 %v268, 4294901760
        %435 = vmatmul.mubr.f32.gmra.mrb[0].mxu0 %v434
        %v436 = vpop.f32.mrb[0].mxu0
        %v437 = vadd.f32 %v346, %v436
        %v438 = vpop.f32.mrb[0].mxu0
        %439 = vdwg.mxu0
        %440 = vmatprep.subr.mxu0 0.0
        %v441 = vand.u32 %v262, 4294901760
        %v442 = vsub.f32 %v262, %v441
        %443 = vmatpush1.msra.mxu0 %v442
        %444 = vmatprep.subr.mxu0 0.0
        %v445 = vand.u32 %v263, 4294901760
        %v446 = vsub.f32 %v263, %v445
        %447 = vmatpush1.msra.mxu0 %v446
        %448 = vmatprep.subr.mxu0 0.0
        %v449 = vand.u32 %v264, 4294901760
        %v450 = vsub.f32 %v264, %v449
        %451 = vmatpush1.msra.mxu0 %v450
        %452 = vmatprep.subr.mxu0 0.0
        %v453 = vand.u32 %v265, 4294901760
        %v454 = vsub.f32 %v265, %v453
        %455 = vmatpush1.msra.mxu0 %v454
        %456 = vmatprep.subr.mxu0 0.0
        %457 = vmatpush1.msra.mxu0 0.0
        %458 = vmatprep.subr.mxu0 0.0
        %459 = vmatpush1.msra.mxu0 0.0
        %460 = vmatprep.subr.mxu0 0.0
        %461 = vmatpush1.msra.mxu0 0.0
        %462 = vmatprep.subr.mxu0 0.0
        %463 = vmatpush1.msra.mxu0 0.0
        %464 = vmatprep.subr.mxu0 0.0
        %465 = vmatpush1.msra.mxu0 0.0
        %466 = vmatprep.subr.mxu0 0.0
        %467 = vmatpush1.msra.mxu0 0.0
        %468 = vmatprep.subr.mxu0 0.0
        %469 = vmatpush1.msra.mxu0 0.0
        %470 = vmatprep.subr.mxu0 0.0
        %471 = vmatpush1.msra.mxu0 0.0
        %472 = vmatprep.subr.mxu0 0.0
        %473 = vmatpush1.msra.mxu0 0.0
        %474 = vmatprep.subr.mxu0 0.0
        %475 = vmatpush1.msra.mxu0 0.0
        %476 = vmatprep.subr.mxu0 0.0
        %477 = vmatpush1.msra.mxu0 0.0
        %478 = vmatprep.subr.mxu0 0.0
        %479 = vmatpush1.msra.mxu0 0.0
        %480 = vmatprep.subr.mxu0 0.0
        %481 = vmatpush1.msra.mxu0 0.0
        %482 = vmatprep.subr.mxu0 0.0
        %483 = vmatpush1.msra.mxu0 0.0
        %484 = vmatprep.subr.mxu0 0.0
        %485 = vmatpush1.msra.mxu0 0.0
        %486 = vmatprep.subr.mxu0 0.0
        %487 = vmatpush1.msra.mxu0 0.0
        %488 = vmatprep.subr.mxu0 0.0
        %489 = vmatpush1.msra.mxu0 0.0
        %490 = vmatprep.subr.mxu0 0.0
        %491 = vmatpush1.msra.mxu0 0.0
        %492 = vmatprep.subr.mxu0 0.0
        %493 = vmatpush1.msra.mxu0 0.0
        %494 = vmatprep.subr.mxu0 0.0
        %495 = vmatpush1.msra.mxu0 0.0
        %496 = vmatprep.subr.mxu0 0.0
        %497 = vmatpush1.msra.mxu0 0.0
        %498 = vmatprep.subr.mxu0 0.0
        %499 = vmatpush1.msra.mxu0 0.0
        %500 = vmatprep.subr.mxu0 0.0
        %501 = vmatpush1.msra.mxu0 0.0
        %502 = vmatprep.subr.mxu0 0.0
        %503 = vmatpush1.msra.mxu0 0.0
        %504 = vmatprep.subr.mxu0 0.0
        %505 = vmatpush1.msra.mxu0 0.0
        %506 = vmatprep.subr.mxu0 0.0
        %507 = vmatpush1.msra.mxu0 0.0
        %508 = vmatprep.subr.mxu0 0.0
        %509 = vmatpush1.msra.mxu0 0.0
        %510 = vmatprep.subr.mxu0 0.0
        %511 = vmatpush1.msra.mxu0 0.0
        %512 = vmatprep.mubr.f32.mxu0 0.0
        %v513 = vand.u32 %v268, 4294901760
        %v514 = vsub.f32 %v268, %v513
        %515 = vmatmul.mubr.f32.gmra.mrb[0].mxu0 %v514
        %v516 = vpop.f32.mrb[0].mxu0
        %v517 = vadd.f32 %v437, %v516
        %v518 = vpop.f32.mrb[0].mxu0
        %519 = vdwg.mxu0
        %520 = vmatprep.subr.mxu0 0.0
        %v521 = vand.u32 %v262, 4294901760
        %522 = vmatpush1.msra.mxu0 %v521
        %523 = vmatprep.subr.mxu0 0.0
        %v524 = vand.u32 %v263, 4294901760
        %525 = vmatpush1.msra.mxu0 %v524
        %526 = vmatprep.subr.mxu0 0.0
        %v527 = vand.u32 %v264, 4294901760
        %528 = vmatpush1.msra.mxu0 %v527
        %529 = vmatprep.subr.mxu0 0.0
        %v530 = vand.u32 %v265, 4294901760
        %531 = vmatpush1.msra.mxu0 %v530
        %532 = vmatprep.subr.mxu0 0.0
        %533 = vmatpush1.msra.mxu0 0.0
        %534 = vmatprep.subr.mxu0 0.0
        %535 = vmatpush1.msra.mxu0 0.0
        %536 = vmatprep.subr.mxu0 0.0
        %537 = vmatpush1.msra.mxu0 0.0
        %538 = vmatprep.subr.mxu0 0.0
        %539 = vmatpush1.msra.mxu0 0.0
        %540 = vmatprep.subr.mxu0 0.0
        %541 = vmatpush1.msra.mxu0 0.0
        %542 = vmatprep.subr.mxu0 0.0
        %543 = vmatpush1.msra.mxu0 0.0
        %544 = vmatprep.subr.mxu0 0.0
        %545 = vmatpush1.msra.mxu0 0.0
        %546 = vmatprep.subr.mxu0 0.0
        %547 = vmatpush1.msra.mxu0 0.0
        %548 = vmatprep.subr.mxu0 0.0
        %549 = vmatpush1.msra.mxu0 0.0
        %550 = vmatprep.subr.mxu0 0.0
        %551 = vmatpush1.msra.mxu0 0.0
        %552 = vmatprep.subr.mxu0 0.0
        %553 = vmatpush1.msra.mxu0 0.0
        %554 = vmatprep.subr.mxu0 0.0
        %555 = vmatpush1.msra.mxu0 0.0
        %556 = vmatprep.subr.mxu0 0.0
        %557 = vmatpush1.msra.mxu0 0.0
        %558 = vmatprep.subr.mxu0 0.0
        %559 = vmatpush1.msra.mxu0 0.0
        %560 = vmatprep.subr.mxu0 0.0
        %561 = vmatpush1.msra.mxu0 0.0
        %562 = vmatprep.subr.mxu0 0.0
        %563 = vmatpush1.msra.mxu0 0.0
        %564 = vmatprep.subr.mxu0 0.0
        %565 = vmatpush1.msra.mxu0 0.0
        %566 = vmatprep.subr.mxu0 0.0
        %567 = vmatpush1.msra.mxu0 0.0
        %568 = vmatprep.subr.mxu0 0.0
        %569 = vmatpush1.msra.mxu0 0.0
        %570 = vmatprep.subr.mxu0 0.0
        %571 = vmatpush1.msra.mxu0 0.0
        %572 = vmatprep.subr.mxu0 0.0
        %573 = vmatpush1.msra.mxu0 0.0
        %574 = vmatprep.subr.mxu0 0.0
        %575 = vmatpush1.msra.mxu0 0.0
        %576 = vmatprep.subr.mxu0 0.0
        %577 = vmatpush1.msra.mxu0 0.0
        %578 = vmatprep.subr.mxu0 0.0
        %579 = vmatpush1.msra.mxu0 0.0
        %580 = vmatprep.subr.mxu0 0.0
        %581 = vmatpush1.msra.mxu0 0.0
        %582 = vmatprep.subr.mxu0 0.0
        %583 = vmatpush1.msra.mxu0 0.0
        %584 = vmatprep.subr.mxu0 0.0
        %585 = vmatpush1.msra.mxu0 0.0
        %586 = vmatprep.subr.mxu0 0.0
        %587 = vmatpush1.msra.mxu0 0.0
        %588 = vmatprep.mubr.f32.mxu0 0.0
        %v589 = vand.u32 %v268, 4294901760
        %v590 = vsub.f32 %v268, %v589
        %v591 = vand.u32 %v590, 4294901760
        %592 = vmatmul.mubr.f32.gmra.mrb[0].mxu0 %v591
        %v593 = vpop.f32.mrb[0].mxu0
        %v594 = vadd.f32 %v517, %v593
        %v595 = vpop.f32.mrb[0].mxu0
        %596 = vdwg.mxu0
        %597 = vmatprep.subr.mxu0 0.0
        %v598 = vand.u32 %v262, 4294901760
        %v599 = vsub.f32 %v262, %v598
        %v600 = vand.u32 %v599, 4294901760
        %601 = vmatpush1.msra.mxu0 %v600
        %602 = vmatprep.subr.mxu0 0.0
        %v603 = vand.u32 %v263, 4294901760
        %v604 = vsub.f32 %v263, %v603
        %v605 = vand.u32 %v604, 4294901760
        %606 = vmatpush1.msra.mxu0 %v605
        %607 = vmatprep.subr.mxu0 0.0
        %v608 = vand.u32 %v264, 4294901760
        %v609 = vsub.f32 %v264, %v608
        %v610 = vand.u32 %v609, 4294901760
        %611 = vmatpush1.msra.mxu0 %v610
        %612 = vmatprep.subr.mxu0 0.0
        %v613 = vand.u32 %v265, 4294901760
        %v614 = vsub.f32 %v265, %v613
        %v615 = vand.u32 %v614, 4294901760
        %616 = vmatpush1.msra.mxu0 %v615
        %617 = vmatprep.subr.mxu0 0.0
        %618 = vmatpush1.msra.mxu0 0.0
        %619 = vmatprep.subr.mxu0 0.0
        %620 = vmatpush1.msra.mxu0 0.0
        %621 = vmatprep.subr.mxu0 0.0
        %622 = vmatpush1.msra.mxu0 0.0
        %623 = vmatprep.subr.mxu0 0.0
        %624 = vmatpush1.msra.mxu0 0.0
        %625 = vmatprep.subr.mxu0 0.0
        %626 = vmatpush1.msra.mxu0 0.0
        %627 = vmatprep.subr.mxu0 0.0
        %628 = vmatpush1.msra.mxu0 0.0
        %629 = vmatprep.subr.mxu0 0.0
        %630 = vmatpush1.msra.mxu0 0.0
        %631 = vmatprep.subr.mxu0 0.0
        %632 = vmatpush1.msra.mxu0 0.0
        %633 = vmatprep.subr.mxu0 0.0
        %634 = vmatpush1.msra.mxu0 0.0
        %635 = vmatprep.subr.mxu0 0.0
        %636 = vmatpush1.msra.mxu0 0.0
        %637 = vmatprep.subr.mxu0 0.0
        %638 = vmatpush1.msra.mxu0 0.0
        %639 = vmatprep.subr.mxu0 0.0
        %640 = vmatpush1.msra.mxu0 0.0
        %641 = vmatprep.subr.mxu0 0.0
        %642 = vmatpush1.msra.mxu0 0.0
        %643 = vmatprep.subr.mxu0 0.0
        %644 = vmatpush1.msra.mxu0 0.0
        %645 = vmatprep.subr.mxu0 0.0
        %646 = vmatpush1.msra.mxu0 0.0
        %647 = vmatprep.subr.mxu0 0.0
        %648 = vmatpush1.msra.mxu0 0.0
        %649 = vmatprep.subr.mxu0 0.0
        %650 = vmatpush1.msra.mxu0 0.0
        %651 = vmatprep.subr.mxu0 0.0
        %652 = vmatpush1.msra.mxu0 0.0
        %653 = vmatprep.subr.mxu0 0.0
        %654 = vmatpush1.msra.mxu0 0.0
        %655 = vmatprep.subr.mxu0 0.0
        %656 = vmatpush1.msra.mxu0 0.0
        %657 = vmatprep.subr.mxu0 0.0
        %658 = vmatpush1.msra.mxu0 0.0
        %659 = vmatprep.subr.mxu0 0.0
        %660 = vmatpush1.msra.mxu0 0.0
        %661 = vmatprep.subr.mxu0 0.0
        %662 = vmatpush1.msra.mxu0 0.0
        %663 = vmatprep.subr.mxu0 0.0
        %664 = vmatpush1.msra.mxu0 0.0
        %665 = vmatprep.subr.mxu0 0.0
        %666 = vmatpush1.msra.mxu0 0.0
        %667 = vmatprep.subr.mxu0 0.0
        %668 = vmatpush1.msra.mxu0 0.0
        %669 = vmatprep.subr.mxu0 0.0
        %670 = vmatpush1.msra.mxu0 0.0
        %671 = vmatprep.subr.mxu0 0.0
        %672 = vmatpush1.msra.mxu0 0.0
        %673 = vmatprep.mubr.f32.mxu0 0.0
        %v674 = vand.u32 %v268, 4294901760
        %675 = vmatmul.mubr.f32.gmra.mrb[0].mxu0 %v674
        %v676 = vpop.f32.mrb[0].mxu0
        %v677 = vadd.f32 %v594, %v676
        %v678 = vpop.f32.mrb[0].mxu0
        %679 = vdwg.mxu0
        %680 = vmatprep.subr.mxu0 0.0
        %v681 = vand.u32 %v262, 4294901760
        %682 = vmatpush1.msra.mxu0 %v681
        %683 = vmatprep.subr.mxu0 0.0
        %v684 = vand.u32 %v263, 4294901760
        %685 = vmatpush1.msra.mxu0 %v684
        %686 = vmatprep.subr.mxu0 0.0
        %v687 = vand.u32 %v264, 4294901760
        %688 = vmatpush1.msra.mxu0 %v687
        %689 = vmatprep.subr.mxu0 0.0
        %v690 = vand.u32 %v265, 4294901760
        %691 = vmatpush1.msra.mxu0 %v690
        %692 = vmatprep.subr.mxu0 0.0
        %693 = vmatpush1.msra.mxu0 0.0
        %694 = vmatprep.subr.mxu0 0.0
        %695 = vmatpush1.msra.mxu0 0.0
        %696 = vmatprep.subr.mxu0 0.0
        %697 = vmatpush1.msra.mxu0 0.0
        %698 = vmatprep.subr.mxu0 0.0
        %699 = vmatpush1.msra.mxu0 0.0
        %700 = vmatprep.subr.mxu0 0.0
        %701 = vmatpush1.msra.mxu0 0.0
        %702 = vmatprep.subr.mxu0 0.0
        %703 = vmatpush1.msra.mxu0 0.0
        %704 = vmatprep.subr.mxu0 0.0
        %705 = vmatpush1.msra.mxu0 0.0
        %706 = vmatprep.subr.mxu0 0.0
        %707 = vmatpush1.msra.mxu0 0.0
        %708 = vmatprep.subr.mxu0 0.0
        %709 = vmatpush1.msra.mxu0 0.0
        %710 = vmatprep.subr.mxu0 0.0
        %711 = vmatpush1.msra.mxu0 0.0
        %712 = vmatprep.subr.mxu0 0.0
        %713 = vmatpush1.msra.mxu0 0.0
        %714 = vmatprep.subr.mxu0 0.0
        %715 = vmatpush1.msra.mxu0 0.0
        %716 = vmatprep.subr.mxu0 0.0
        %717 = vmatpush1.msra.mxu0 0.0
        %718 = vmatprep.subr.mxu0 0.0
        %719 = vmatpush1.msra.mxu0 0.0
        %720 = vmatprep.subr.mxu0 0.0
        %721 = vmatpush1.msra.mxu0 0.0
        %722 = vmatprep.subr.mxu0 0.0
        %723 = vmatpush1.msra.mxu0 0.0
        %724 = vmatprep.subr.mxu0 0.0
        %725 = vmatpush1.msra.mxu0 0.0
        %726 = vmatprep.subr.mxu0 0.0
        %727 = vmatpush1.msra.mxu0 0.0
        %728 = vmatprep.subr.mxu0 0.0
        %729 = vmatpush1.msra.mxu0 0.0
        %730 = vmatprep.subr.mxu0 0.0
        %731 = vmatpush1.msra.mxu0 0.0
        %732 = vmatprep.subr.mxu0 0.0
        %733 = vmatpush1.msra.mxu0 0.0
        %734 = vmatprep.subr.mxu0 0.0
        %735 = vmatpush1.msra.mxu0 0.0
        %736 = vmatprep.subr.mxu0 0.0
        %737 = vmatpush1.msra.mxu0 0.0
        %738 = vmatprep.subr.mxu0 0.0
        %739 = vmatpush1.msra.mxu0 0.0
        %740 = vmatprep.subr.mxu0 0.0
        %741 = vmatpush1.msra.mxu0 0.0
        %742 = vmatprep.subr.mxu0 0.0
        %743 = vmatpush1.msra.mxu0 0.0
        %744 = vmatprep.subr.mxu0 0.0
        %745 = vmatpush1.msra.mxu0 0.0
        %746 = vmatprep.subr.mxu0 0.0
        %747 = vmatpush1.msra.mxu0 0.0
        %748 = vmatprep.mubr.f32.mxu0 0.0
        %v749 = vand.u32 %v268, 4294901760
        %750 = vmatmul.mubr.f32.gmra.mrb[0].mxu0 %v749
        %v751 = vpop.f32.mrb[0].mxu0
        %v752 = vadd.f32 %v677, %v751
        %v753 = vpop.f32.mrb[0].mxu0
        %754 = vdwg.mxu0
        %v756 = vcombine.high %v752, %v752
        %v758 = vunpack.c.l.s4 1966171168
        %v759 = vunpack.c.0.s8 %v758
        %v760 = vlaneseq
        %v761 = vshrl.u32 %v760, 7
        %v762 = vsub.s32 %v759, %v761
        %v763 = vrot.slane %v752, %v762
        %v765 = vunpack.c.l.s4 1966171168
        %v766 = vunpack.c.0.s8 %v765
        %v767 = vlaneseq
        %v768 = vshrl.u32 %v767, 7
        %v769 = vsub.s32 %v766, %v768
        %v770 = vrot.slane %v756, %v769
        %v771 = vcombine.high %v763, %v763
        %v772 = vcombine.high %v770, %v770
        %v774 = vunpack.c.l.s4 1966171168
        %v775 = vunpack.c.0.s8 %v774
        %v776 = vlaneseq
        %v777 = vshrl.u32 %v776, 7
        %v778 = vsub.s32 %v775, %v777
        %v779 = vrot.slane %v763, %v778
        %v781 = vunpack.c.l.s4 1966171168
        %v782 = vunpack.c.0.s8 %v781
        %v783 = vlaneseq
        %v784 = vshrl.u32 %v783, 7
        %v785 = vsub.s32 %v782, %v784
        %v786 = vrot.slane %v770, %v785
        %v788 = vunpack.c.l.s4 1966171168
        %v789 = vunpack.c.0.s8 %v788
        %v790 = vlaneseq
        %v791 = vshrl.u32 %v790, 7
        %v792 = vsub.s32 %v789, %v791
        %v793 = vrot.slane %v771, %v792
        %v795 = vunpack.c.l.s4 1966171168
        %v796 = vunpack.c.0.s8 %v795
        %v797 = vlaneseq
        %v798 = vshrl.u32 %v797, 7
        %v799 = vsub.s32 %v796, %v798
        %v800 = vrot.slane %v772, %v799
        %v801 = vcombine.high %v779, %v779
        %v802 = vcombine.high %v786, %v786
        %v803 = vcombine.high %v793, %v793
        %v804 = vcombine.high %v800, %v800
        %v805 = vlaneseq
        %v806 = vshrl.u32 %v805, 7
        %v807 = vsub.s32 0, %v806
        %v808 = vrot.slane %v779, %v807
        %v809 = vlaneseq
        %v810 = vshrl.u32 %v809, 7
        %v811 = vsub.s32 0, %v810
        %v812 = vrot.slane %v793, %v811
        %v813 = vlaneseq
        %v814 = vshrl.u32 %v813, 7
        %v815 = vsub.s32 0, %v814
        %v816 = vrot.slane %v801, %v815
        %v817 = vlaneseq
        %v818 = vshrl.u32 %v817, 7
        %v819 = vsub.s32 0, %v818
        %v820 = vrot.slane %v803, %v819
        %v821 = vlaneseq
        %v822 = vshrl.u32 %v821, 7
        %v823 = vsub.s32 0, %v822
        %v824 = vrot.slane %v786, %v823
        %v825 = vlaneseq
        %v826 = vshrl.u32 %v825, 7
        %v827 = vsub.s32 0, %v826
        %v828 = vrot.slane %v800, %v827
        %v829 = vlaneseq
        %v830 = vshrl.u32 %v829, 7
        %v831 = vsub.s32 0, %v830
        %v832 = vrot.slane %v802, %v831
        %v833 = vlaneseq
        %v834 = vshrl.u32 %v833, 7
        %v835 = vsub.s32 0, %v834
        %v836 = vrot.slane %v804, %v835
        %v845 = vmul.f32 %v254, %v808
        %v846 = vmul.f32 %v255, %v812
        %v847 = vmul.f32 %v256, %v816
        %v848 = vmul.f32 %v257, %v820
        %v849 = vmul.f32 %v258, %v824
        %v850 = vmul.f32 %v259, %v828
        %v851 = vmul.f32 %v260, %v832
        %v852 = vmul.f32 %v261, %v836
        %v853 = vsel %vm266, %v845, 0.0
        %854 = vadd.xlane.f32.xlu0 %v853
        %v855 = vpop.xlane.xlu0 %854
        %v856 = vsel %vm266, %v846, 0.0
        %857 = vadd.xlane.f32.xlu0 %v856
        %v858 = vpop.xlane.xlu0 %857
        %v859 = vsel %vm266, %v847, 0.0
        %860 = vadd.xlane.f32.xlu0 %v859
        %v861 = vpop.xlane.xlu0 %860
        %v862 = vsel %vm266, %v848, 0.0
        %863 = vadd.xlane.f32.xlu0 %v862
        %v864 = vpop.xlane.xlu0 %863
        %v865 = vsel %vm266, %v849, 0.0
        %866 = vadd.xlane.f32.xlu0 %v865
        %v867 = vpop.xlane.xlu0 %866
        %v868 = vsel %vm266, %v850, 0.0
        %869 = vadd.xlane.f32.xlu0 %v868
        %v870 = vpop.xlane.xlu0 %869
        %v871 = vsel %vm266, %v851, 0.0
        %872 = vadd.xlane.f32.xlu0 %v871
        %v873 = vpop.xlane.xlu0 %872
        %v874 = vsel %vm266, %v852, 0.0
        %875 = vadd.xlane.f32.xlu0 %v874
        %v876 = vpop.xlane.xlu0 %875
        %v885 = vlaneseq
        %v886 = vand.u32 %v885, 127
        %v887 = vlaneseq
        %v888 = vshrl.u32 %v887, 7
        %v889 = vsub.s32 %v886, %v888
        %v890 = vrot.slane %v855, %v889
        %v891 = vlaneseq
        %v892 = vshrl.u32 %v891, 7
        %v893 = vsub.s32 %v886, %v892
        %v894 = vrot.slane %v858, %v893
        %v895 = vlaneseq
        %v896 = vshrl.u32 %v895, 7
        %v897 = vsub.s32 %v886, %v896
        %v898 = vrot.slane %v861, %v897
        %v899 = vlaneseq
        %v900 = vshrl.u32 %v899, 7
        %v901 = vsub.s32 %v886, %v900
        %v902 = vrot.slane %v864, %v901
        %v903 = vlaneseq
        %v904 = vshrl.u32 %v903, 7
        %v905 = vsub.s32 %v886, %v904
        %v906 = vrot.slane %v867, %v905
        %v907 = vlaneseq
        %v908 = vshrl.u32 %v907, 7
        %v909 = vsub.s32 %v886, %v908
        %v910 = vrot.slane %v870, %v909
        %v911 = vlaneseq
        %v912 = vshrl.u32 %v911, 7
        %v913 = vsub.s32 %v886, %v912
        %v914 = vrot.slane %v873, %v913
        %v915 = vlaneseq
        %v916 = vshrl.u32 %v915, 7
        %v917 = vsub.s32 %v886, %v916
        %v918 = vrot.slane %v876, %v917
        %vm919 = vcmask 1041409
        %v920 = vsel %vm919, %v894, %v890
        %vm921 = vcmask 1042434
        %v922 = vsel %vm921, %v898, %v920
        %vm923 = vcmask 1043459
        %v924 = vsel %vm923, %v902, %v922
        %vm925 = vcmask 1044484
        %v926 = vsel %vm925, %v906, %v924
        %vm927 = vcmask 1045509
        %v928 = vsel %vm927, %v910, %v926
        %vm929 = vcmask 1046534
        %v930 = vsel %vm929, %v914, %v928
        %vm931 = vcmask 1047559
        %v932 = vsel %vm931, %v918, %v930
        %vm934 = vcmask 64512
        %v935 = vsel %vm934, %v932, -inf
        %936 = vmax.xlane.f32.xlu0 %v935
        %v937 = vpop.xlane.xlu0 %936
        %v939 = vlaneseq
        %v940 = vshrl.u32 %v939, 7
        %v941 = vsub.s32 0, %v940
        %v942 = vrot.slane %v937, %v941
        %v943 = vlaneseq
        %v944 = vshrl.u32 %v943, 7
        %v945 = vsub.s32 1, %v944
        %v946 = vrot.slane %v937, %v945
        %v947 = vlaneseq
        %v948 = vshrl.u32 %v947, 7
        %v949 = vsub.s32 2, %v948
        %v950 = vrot.slane %v937, %v949
        %v951 = vlaneseq
        %v952 = vshrl.u32 %v951, 7
        %v953 = vsub.s32 3, %v952
        %v954 = vrot.slane %v937, %v953
        %v955 = vlaneseq
        %v956 = vshrl.u32 %v955, 7
        %v957 = vsub.s32 4, %v956
        %v958 = vrot.slane %v937, %v957
        %v959 = vlaneseq
        %v960 = vshrl.u32 %v959, 7
        %v961 = vsub.s32 5, %v960
        %v962 = vrot.slane %v937, %v961
        %v963 = vlaneseq
        %v964 = vshrl.u32 %v963, 7
        %v965 = vsub.s32 6, %v964
        %v966 = vrot.slane %v937, %v965
        %v967 = vlaneseq
        %v968 = vshrl.u32 %v967, 7
        %v969 = vsub.s32 7, %v968
        %v970 = vrot.slane %v937, %v969
        %v979 = vsub.f32 %v855, %v942
        %v980 = vsub.f32 %v858, %v946
        %v981 = vsub.f32 %v861, %v950
        %v982 = vsub.f32 %v864, %v954
        %v983 = vsub.f32 %v867, %v958
        %v984 = vsub.f32 %v870, %v962
        %v985 = vsub.f32 %v873, %v966
        %v986 = vsub.f32 %v876, %v970
        %v987 = vmul.f32 %v979, 1.442695
        %v988 = vpow.pop %v987
        %v989 = vmul.f32 %v980, 1.442695
        %v990 = vpow.pop %v989
        %v991 = vmul.f32 %v981, 1.442695
        %v992 = vpow.pop %v991
        %v993 = vmul.f32 %v982, 1.442695
        %v994 = vpow.pop %v993
        %v995 = vmul.f32 %v983, 1.442695
        %v996 = vpow.pop %v995
        %v997 = vmul.f32 %v984, 1.442695
        %v998 = vpow.pop %v997
        %v999 = vmul.f32 %v985, 1.442695
        %v1000 = vpow.pop %v999
        %v1001 = vmul.f32 %v986, 1.442695
        %v1002 = vpow.pop %v1001
        %1011 = vset.pattern.permute.xlu0 0
        %1012 = vperm.xlu0 %1011, %v988
        %v1013 = vpop.permute.xlu0 %1012
        %1014 = vset.pattern.permute.xlu0 0
        %1015 = vperm.xlu0 %1014, %v990
        %v1016 = vpop.permute.xlu0 %1015
        %1017 = vset.pattern.permute.xlu0 0
        %1018 = vperm.xlu0 %1017, %v992
        %v1019 = vpop.permute.xlu0 %1018
        %1020 = vset.pattern.permute.xlu0 0
        %1021 = vperm.xlu0 %1020, %v994
        %v1022 = vpop.permute.xlu0 %1021
        %1023 = vset.pattern.permute.xlu0 0
        %1024 = vperm.xlu0 %1023, %v996
        %v1025 = vpop.permute.xlu0 %1024
        %1026 = vset.pattern.permute.xlu0 0
        %1027 = vperm.xlu0 %1026, %v998
        %v1028 = vpop.permute.xlu0 %1027
        %1029 = vset.pattern.permute.xlu0 0
        %1030 = vperm.xlu0 %1029, %v1000
        %v1031 = vpop.permute.xlu0 %1030
        %1032 = vset.pattern.permute.xlu0 0
        %1033 = vperm.xlu0 %1032, %v1002
        %v1034 = vpop.permute.xlu0 %1033
        %v1035 = vlaneseq
        %v1036 = vshrl.u32 %v1035, 7
        %v1037 = vsub.s32 %v886, %v1036
        %v1038 = vrot.slane %v1013, %v1037
        %v1039 = vlaneseq
        %v1040 = vshrl.u32 %v1039, 7
        %v1041 = vsub.s32 %v886, %v1040
        %v1042 = vrot.slane %v1016, %v1041
        %v1043 = vlaneseq
        %v1044 = vshrl.u32 %v1043, 7
        %v1045 = vsub.s32 %v886, %v1044
        %v1046 = vrot.slane %v1019, %v1045
        %v1047 = vlaneseq
        %v1048 = vshrl.u32 %v1047, 7
        %v1049 = vsub.s32 %v886, %v1048
        %v1050 = vrot.slane %v1022, %v1049
        %v1051 = vlaneseq
        %v1052 = vshrl.u32 %v1051, 7
        %v1053 = vsub.s32 %v886, %v1052
        %v1054 = vrot.slane %v1025, %v1053
        %v1055 = vlaneseq
        %v1056 = vshrl.u32 %v1055, 7
        %v1057 = vsub.s32 %v886, %v1056
        %v1058 = vrot.slane %v1028, %v1057
        %v1059 = vlaneseq
        %v1060 = vshrl.u32 %v1059, 7
        %v1061 = vsub.s32 %v886, %v1060
        %v1062 = vrot.slane %v1031, %v1061
        %v1063 = vlaneseq
        %v1064 = vshrl.u32 %v1063, 7
        %v1065 = vsub.s32 %v886, %v1064
        %v1066 = vrot.slane %v1034, %v1065
        %v1067 = vsel %vm919, %v1042, %v1038
        %v1068 = vsel %vm921, %v1046, %v1067
        %v1069 = vsel %vm923, %v1050, %v1068
        %v1070 = vsel %vm925, %v1054, %v1069
        %v1071 = vsel %vm927, %v1058, %v1070
        %v1072 = vsel %vm929, %v1062, %v1071
        %v1073 = vsel %vm931, %v1066, %v1072
        %v1075 = vsel %vm934, %v1073, 0.0
        %1076 = vadd.xlane.f32.xlu0 %v1075
        %v1077 = vpop.xlane.xlu0 %1076
        %v1079 = vlaneseq
        %v1080 = vshrl.u32 %v1079, 7
        %v1081 = vsub.s32 0, %v1080
        %v1082 = vrot.slane %v1077, %v1081
        %v1083 = vlaneseq
        %v1084 = vshrl.u32 %v1083, 7
        %v1085 = vsub.s32 1, %v1084
        %v1086 = vrot.slane %v1077, %v1085
        %v1087 = vlaneseq
        %v1088 = vshrl.u32 %v1087, 7
        %v1089 = vsub.s32 2, %v1088
        %v1090 = vrot.slane %v1077, %v1089
        %v1091 = vlaneseq
        %v1092 = vshrl.u32 %v1091, 7
        %v1093 = vsub.s32 3, %v1092
        %v1094 = vrot.slane %v1077, %v1093
        %v1095 = vlaneseq
        %v1096 = vshrl.u32 %v1095, 7
        %v1097 = vsub.s32 4, %v1096
        %v1098 = vrot.slane %v1077, %v1097
        %v1099 = vlaneseq
        %v1100 = vshrl.u32 %v1099, 7
        %v1101 = vsub.s32 5, %v1100
        %v1102 = vrot.slane %v1077, %v1101
        %v1103 = vlaneseq
        %v1104 = vshrl.u32 %v1103, 7
        %v1105 = vsub.s32 6, %v1104
        %v1106 = vrot.slane %v1077, %v1105
        %v1107 = vlaneseq
        %v1108 = vshrl.u32 %v1107, 7
        %v1109 = vsub.s32 7, %v1108
        %v1110 = vrot.slane %v1077, %v1109
        %v1119 = vrcp.pop %v1082
        %v1120 = vmul.f32 %v988, %v1119
        %v1121 = vrcp.pop %v1086
        %v1122 = vmul.f32 %v990, %v1121
        %v1123 = vrcp.pop %v1090
        %v1124 = vmul.f32 %v992, %v1123
        %v1125 = vrcp.pop %v1094
        %v1126 = vmul.f32 %v994, %v1125
        %v1127 = vrcp.pop %v1098
        %v1128 = vmul.f32 %v996, %v1127
        %v1129 = vrcp.pop %v1102
        %v1130 = vmul.f32 %v998, %v1129
        %v1131 = vrcp.pop %v1106
        %v1132 = vmul.f32 %v1000, %v1131
        %v1133 = vrcp.pop %v1110
        %v1134 = vmul.f32 %v1002, %v1133
        %1136 = vset.pattern.permute.xlu0 0
        %1137 = vperm.xlu0 %1136, %v1120
        %v1138 = vpop.permute.xlu0 %1137
        %1141 = vset.pattern.permute.xlu0 0
        %1142 = vperm.xlu0 %1141, %v1122
        %v1143 = vpop.permute.xlu0 %1142
        %1146 = vset.pattern.permute.xlu0 0
        %1147 = vperm.xlu0 %1146, %v1124
        %v1148 = vpop.permute.xlu0 %1147
        %1151 = vset.pattern.permute.xlu0 0
        %1152 = vperm.xlu0 %1151, %v1126
        %v1153 = vpop.permute.xlu0 %1152
        %1156 = vset.pattern.permute.xlu0 0
        %1157 = vperm.xlu0 %1156, %v1128
        %v1158 = vpop.permute.xlu0 %1157
        %1161 = vset.pattern.permute.xlu0 0
        %1162 = vperm.xlu0 %1161, %v1130
        %v1163 = vpop.permute.xlu0 %1162
        %1166 = vset.pattern.permute.xlu0 0
        %1167 = vperm.xlu0 %1166, %v1132
        %v1168 = vpop.permute.xlu0 %1167
        %1171 = vset.pattern.permute.xlu0 0
        %1172 = vperm.xlu0 %1171, %v1134
        %v1173 = vpop.permute.xlu0 %1172
        %v1175 = vmul.f32 %v1138, %v254
        %v1176 = vmul.f32 %v1143, %v255
        %v1177 = vmul.f32 %v1148, %v256
        %v1178 = vmul.f32 %v1153, %v257
        %v1179 = vmul.f32 %v1158, %v258
        %v1180 = vmul.f32 %v1163, %v259
        %v1181 = vmul.f32 %v1168, %v260
        %v1182 = vmul.f32 %v1173, %v261
        %v1183 = vsel %vm266, %v1175, 0.0
        %v1184 = vrot.slane %v1183, 4
        %v1185 = vadd.f32 %v1183, %v1184
        %v1186 = vrot.slane %v1185, 2
        %v1187 = vadd.f32 %v1185, %v1186
        %v1188 = vrot.slane %v1187, 1
        %v1189 = vadd.f32 %v1187, %v1188
        %v1190 = vsel %vm266, %v1176, 0.0
        %v1191 = vrot.slane %v1190, 4
        %v1192 = vadd.f32 %v1190, %v1191
        %v1193 = vrot.slane %v1192, 2
        %v1194 = vadd.f32 %v1192, %v1193
        %v1195 = vrot.slane %v1194, 1
        %v1196 = vadd.f32 %v1194, %v1195
        %v1197 = vsel %vm266, %v1177, 0.0
        %v1198 = vrot.slane %v1197, 4
        %v1199 = vadd.f32 %v1197, %v1198
        %v1200 = vrot.slane %v1199, 2
        %v1201 = vadd.f32 %v1199, %v1200
        %v1202 = vrot.slane %v1201, 1
        %v1203 = vadd.f32 %v1201, %v1202
        %v1204 = vsel %vm266, %v1178, 0.0
        %v1205 = vrot.slane %v1204, 4
        %v1206 = vadd.f32 %v1204, %v1205
        %v1207 = vrot.slane %v1206, 2
        %v1208 = vadd.f32 %v1206, %v1207
        %v1209 = vrot.slane %v1208, 1
        %v1210 = vadd.f32 %v1208, %v1209
        %v1211 = vsel %vm266, %v1179, 0.0
        %v1212 = vrot.slane %v1211, 4
        %v1213 = vadd.f32 %v1211, %v1212
        %v1214 = vrot.slane %v1213, 2
        %v1215 = vadd.f32 %v1213, %v1214
        %v1216 = vrot.slane %v1215, 1
        %v1217 = vadd.f32 %v1215, %v1216
        %v1218 = vsel %vm266, %v1180, 0.0
        %v1219 = vrot.slane %v1218, 4
        %v1220 = vadd.f32 %v1218, %v1219
        %v1221 = vrot.slane %v1220, 2
        %v1222 = vadd.f32 %v1220, %v1221
        %v1223 = vrot.slane %v1222, 1
        %v1224 = vadd.f32 %v1222, %v1223
        %v1225 = vsel %vm266, %v1181, 0.0
        %v1226 = vrot.slane %v1225, 4
        %v1227 = vadd.f32 %v1225, %v1226
        %v1228 = vrot.slane %v1227, 2
        %v1229 = vadd.f32 %v1227, %v1228
        %v1230 = vrot.slane %v1229, 1
        %v1231 = vadd.f32 %v1229, %v1230
        %v1232 = vsel %vm266, %v1182, 0.0
        %v1233 = vrot.slane %v1232, 4
        %v1234 = vadd.f32 %v1232, %v1233
        %v1235 = vrot.slane %v1234, 2
        %v1236 = vadd.f32 %v1234, %v1235
        %v1237 = vrot.slane %v1236, 1
        %v1238 = vadd.f32 %v1236, %v1237
        %v1239 = vld [vmem:[%s3] sm:$0xff]
        %v1240 = vld [vmem:[%s3 + $0x8] sm:$0xff]
        %v1241 = vld [vmem:[%s3 + $0x10] sm:$0xff]
        %v1242 = vld [vmem:[%s3 + $0x18] sm:$0xff]
        %v1251 = vsel %vm919, %v1196, %v1189
        %v1252 = vsel %vm921, %v1203, %v1251
        %v1253 = vsel %vm923, %v1210, %v1252
        %v1254 = vsel %vm925, %v1217, %v1253
        %v1255 = vsel %vm927, %v1224, %v1254
        %v1256 = vsel %vm929, %v1231, %v1255
        %v1257 = vsel %vm931, %v1238, %v1256
        %1258 = vrot.lane.b32.xlu0 %v752, 96
        %v1259 = vpop.permute.xlu0 %1258
        %v1261 = vsel %vm266, %v1257, 0
        %1263 = vmatprep.subr.mxu0 0.0
        %v1264 = vand.u32 %v1239, 4294901760
        %1265 = vmatpush1.msra.mxu0 %v1264
        %1266 = vmatprep.subr.mxu0 0.0
        %v1267 = vand.u32 %v1240, 4294901760
        %1268 = vmatpush1.msra.mxu0 %v1267
        %1269 = vmatprep.subr.mxu0 0.0
        %v1270 = vand.u32 %v1241, 4294901760
        %1271 = vmatpush1.msra.mxu0 %v1270
        %1272 = vmatprep.subr.mxu0 0.0
        %v1273 = vand.u32 %v1242, 4294901760
        %1274 = vmatpush1.msra.mxu0 %v1273
        %1275 = vmatprep.subr.mxu0 0.0
        %1276 = vmatpush1.msra.mxu0 0.0
        %1277 = vmatprep.subr.mxu0 0.0
        %1278 = vmatpush1.msra.mxu0 0.0
        %1279 = vmatprep.subr.mxu0 0.0
        %1280 = vmatpush1.msra.mxu0 0.0
        %1281 = vmatprep.subr.mxu0 0.0
        %1282 = vmatpush1.msra.mxu0 0.0
        %1283 = vmatprep.subr.mxu0 0.0
        %1284 = vmatpush1.msra.mxu0 0.0
        %1285 = vmatprep.subr.mxu0 0.0
        %1286 = vmatpush1.msra.mxu0 0.0
        %1287 = vmatprep.subr.mxu0 0.0
        %1288 = vmatpush1.msra.mxu0 0.0
        %1289 = vmatprep.subr.mxu0 0.0
        %1290 = vmatpush1.msra.mxu0 0.0
        %1291 = vmatprep.subr.mxu0 0.0
        %1292 = vmatpush1.msra.mxu0 0.0
        %1293 = vmatprep.subr.mxu0 0.0
        %1294 = vmatpush1.msra.mxu0 0.0
        %1295 = vmatprep.subr.mxu0 0.0
        %1296 = vmatpush1.msra.mxu0 0.0
        %1297 = vmatprep.subr.mxu0 0.0
        %1298 = vmatpush1.msra.mxu0 0.0
        %1299 = vmatprep.subr.mxu0 0.0
        %1300 = vmatpush1.msra.mxu0 0.0
        %1301 = vmatprep.subr.mxu0 0.0
        %1302 = vmatpush1.msra.mxu0 0.0
        %1303 = vmatprep.subr.mxu0 0.0
        %1304 = vmatpush1.msra.mxu0 0.0
        %1305 = vmatprep.subr.mxu0 0.0
        %1306 = vmatpush1.msra.mxu0 0.0
        %1307 = vmatprep.subr.mxu0 0.0
        %1308 = vmatpush1.msra.mxu0 0.0
        %1309 = vmatprep.subr.mxu0 0.0
        %1310 = vmatpush1.msra.mxu0 0.0
        %1311 = vmatprep.subr.mxu0 0.0
        %1312 = vmatpush1.msra.mxu0 0.0
        %1313 = vmatprep.subr.mxu0 0.0
        %1314 = vmatpush1.msra.mxu0 0.0
        %1315 = vmatprep.subr.mxu0 0.0
        %1316 = vmatpush1.msra.mxu0 0.0
        %1317 = vmatprep.subr.mxu0 0.0
        %1318 = vmatpush1.msra.mxu0 0.0
        %1319 = vmatprep.subr.mxu0 0.0
        %1320 = vmatpush1.msra.mxu0 0.0
        %1321 = vmatprep.subr.mxu0 0.0
        %1322 = vmatpush1.msra.mxu0 0.0
        %1323 = vmatprep.subr.mxu0 0.0
        %1324 = vmatpush1.msra.mxu0 0.0
        %1325 = vmatprep.subr.mxu0 0.0
        %1326 = vmatpush1.msra.mxu0 0.0
        %1327 = vmatprep.subr.mxu0 0.0
        %1328 = vmatpush1.msra.mxu0 0.0
        %1329 = vmatprep.subr.mxu0 0.0
        %1330 = vmatpush1.msra.mxu0 0.0
        %1331 = vmatprep.mubr.f32.mxu0 0.0
        %v1332 = vand.u32 %v1261, 4294901760
        %v1333 = vsub.f32 %v1261, %v1332
        %v1334 = vand.u32 %v1333, 4294901760
        %v1335 = vsub.f32 %v1333, %v1334
        %v1336 = vand.u32 %v1335, 4294901760
        %1337 = vmatmul.mubr.f32.gmra.mrb[0].mxu0 %v1336
        %v1338 = vpop.f32.mrb[0].mxu0
        %v1339 = vadd.f32 %v1259, %v1338
        %v1340 = vpop.f32.mrb[0].mxu0
        %1341 = vdwg.mxu0
        %1342 = vmatprep.subr.mxu0 0.0
        %v1343 = vand.u32 %v1239, 4294901760
        %v1344 = vsub.f32 %v1239, %v1343
        %v1345 = vand.u32 %v1344, 4294901760
        %v1346 = vsub.f32 %v1344, %v1345
        %v1347 = vand.u32 %v1346, 4294901760
        %1348 = vmatpush1.msra.mxu0 %v1347
        %1349 = vmatprep.subr.mxu0 0.0
        %v1350 = vand.u32 %v1240, 4294901760
        %v1351 = vsub.f32 %v1240, %v1350
        %v1352 = vand.u32 %v1351, 4294901760
        %v1353 = vsub.f32 %v1351, %v1352
        %v1354 = vand.u32 %v1353, 4294901760
        %1355 = vmatpush1.msra.mxu0 %v1354
        %1356 = vmatprep.subr.mxu0 0.0
        %v1357 = vand.u32 %v1241, 4294901760
        %v1358 = vsub.f32 %v1241, %v1357
        %v1359 = vand.u32 %v1358, 4294901760
        %v1360 = vsub.f32 %v1358, %v1359
        %v1361 = vand.u32 %v1360, 4294901760
        %1362 = vmatpush1.msra.mxu0 %v1361
        %1363 = vmatprep.subr.mxu0 0.0
        %v1364 = vand.u32 %v1242, 4294901760
        %v1365 = vsub.f32 %v1242, %v1364
        %v1366 = vand.u32 %v1365, 4294901760
        %v1367 = vsub.f32 %v1365, %v1366
        %v1368 = vand.u32 %v1367, 4294901760
        %1369 = vmatpush1.msra.mxu0 %v1368
        %1370 = vmatprep.subr.mxu0 0.0
        %1371 = vmatpush1.msra.mxu0 0.0
        %1372 = vmatprep.subr.mxu0 0.0
        %1373 = vmatpush1.msra.mxu0 0.0
        %1374 = vmatprep.subr.mxu0 0.0
        %1375 = vmatpush1.msra.mxu0 0.0
        %1376 = vmatprep.subr.mxu0 0.0
        %1377 = vmatpush1.msra.mxu0 0.0
        %1378 = vmatprep.subr.mxu0 0.0
        %1379 = vmatpush1.msra.mxu0 0.0
        %1380 = vmatprep.subr.mxu0 0.0
        %1381 = vmatpush1.msra.mxu0 0.0
        %1382 = vmatprep.subr.mxu0 0.0
        %1383 = vmatpush1.msra.mxu0 0.0
        %1384 = vmatprep.subr.mxu0 0.0
        %1385 = vmatpush1.msra.mxu0 0.0
        %1386 = vmatprep.subr.mxu0 0.0
        %1387 = vmatpush1.msra.mxu0 0.0
        %1388 = vmatprep.subr.mxu0 0.0
        %1389 = vmatpush1.msra.mxu0 0.0
        %1390 = vmatprep.subr.mxu0 0.0
        %1391 = vmatpush1.msra.mxu0 0.0
        %1392 = vmatprep.subr.mxu0 0.0
        %1393 = vmatpush1.msra.mxu0 0.0
        %1394 = vmatprep.subr.mxu0 0.0
        %1395 = vmatpush1.msra.mxu0 0.0
        %1396 = vmatprep.subr.mxu0 0.0
        %1397 = vmatpush1.msra.mxu0 0.0
        %1398 = vmatprep.subr.mxu0 0.0
        %1399 = vmatpush1.msra.mxu0 0.0
        %1400 = vmatprep.subr.mxu0 0.0
        %1401 = vmatpush1.msra.mxu0 0.0
        %1402 = vmatprep.subr.mxu0 0.0
        %1403 = vmatpush1.msra.mxu0 0.0
        %1404 = vmatprep.subr.mxu0 0.0
        %1405 = vmatpush1.msra.mxu0 0.0
        %1406 = vmatprep.subr.mxu0 0.0
        %1407 = vmatpush1.msra.mxu0 0.0
        %1408 = vmatprep.subr.mxu0 0.0
        %1409 = vmatpush1.msra.mxu0 0.0
        %1410 = vmatprep.subr.mxu0 0.0
        %1411 = vmatpush1.msra.mxu0 0.0
        %1412 = vmatprep.subr.mxu0 0.0
        %1413 = vmatpush1.msra.mxu0 0.0
        %1414 = vmatprep.subr.mxu0 0.0
        %1415 = vmatpush1.msra.mxu0 0.0
        %1416 = vmatprep.subr.mxu0 0.0
        %1417 = vmatpush1.msra.mxu0 0.0
        %1418 = vmatprep.subr.mxu0 0.0
        %1419 = vmatpush1.msra.mxu0 0.0
        %1420 = vmatprep.subr.mxu0 0.0
        %1421 = vmatpush1.msra.mxu0 0.0
        %1422 = vmatprep.subr.mxu0 0.0
        %1423 = vmatpush1.msra.mxu0 0.0
        %1424 = vmatprep.subr.mxu0 0.0
        %1425 = vmatpush1.msra.mxu0 0.0
        %1426 = vmatprep.mubr.f32.mxu0 0.0
        %v1427 = vand.u32 %v1261, 4294901760
        %1428 = vmatmul.mubr.f32.gmra.mrb[0].mxu0 %v1427
        %v1429 = vpop.f32.mrb[0].mxu0
        %v1430 = vadd.f32 %v1339, %v1429
        %v1431 = vpop.f32.mrb[0].mxu0
        %1432 = vdwg.mxu0
        %1433 = vmatprep.subr.mxu0 0.0
        %v1434 = vand.u32 %v1239, 4294901760
        %v1435 = vsub.f32 %v1239, %v1434
        %1436 = vmatpush1.msra.mxu0 %v1435
        %1437 = vmatprep.subr.mxu0 0.0
        %v1438 = vand.u32 %v1240, 4294901760
        %v1439 = vsub.f32 %v1240, %v1438
        %1440 = vmatpush1.msra.mxu0 %v1439
        %1441 = vmatprep.subr.mxu0 0.0
        %v1442 = vand.u32 %v1241, 4294901760
        %v1443 = vsub.f32 %v1241, %v1442
        %1444 = vmatpush1.msra.mxu0 %v1443
        %1445 = vmatprep.subr.mxu0 0.0
        %v1446 = vand.u32 %v1242, 4294901760
        %v1447 = vsub.f32 %v1242, %v1446
        %1448 = vmatpush1.msra.mxu0 %v1447
        %1449 = vmatprep.subr.mxu0 0.0
        %1450 = vmatpush1.msra.mxu0 0.0
        %1451 = vmatprep.subr.mxu0 0.0
        %1452 = vmatpush1.msra.mxu0 0.0
        %1453 = vmatprep.subr.mxu0 0.0
        %1454 = vmatpush1.msra.mxu0 0.0
        %1455 = vmatprep.subr.mxu0 0.0
        %1456 = vmatpush1.msra.mxu0 0.0
        %1457 = vmatprep.subr.mxu0 0.0
        %1458 = vmatpush1.msra.mxu0 0.0
        %1459 = vmatprep.subr.mxu0 0.0
        %1460 = vmatpush1.msra.mxu0 0.0
        %1461 = vmatprep.subr.mxu0 0.0
        %1462 = vmatpush1.msra.mxu0 0.0
        %1463 = vmatprep.subr.mxu0 0.0
        %1464 = vmatpush1.msra.mxu0 0.0
        %1465 = vmatprep.subr.mxu0 0.0
        %1466 = vmatpush1.msra.mxu0 0.0
        %1467 = vmatprep.subr.mxu0 0.0
        %1468 = vmatpush1.msra.mxu0 0.0
        %1469 = vmatprep.subr.mxu0 0.0
        %1470 = vmatpush1.msra.mxu0 0.0
        %1471 = vmatprep.subr.mxu0 0.0
        %1472 = vmatpush1.msra.mxu0 0.0
        %1473 = vmatprep.subr.mxu0 0.0
        %1474 = vmatpush1.msra.mxu0 0.0
        %1475 = vmatprep.subr.mxu0 0.0
        %1476 = vmatpush1.msra.mxu0 0.0
        %1477 = vmatprep.subr.mxu0 0.0
        %1478 = vmatpush1.msra.mxu0 0.0
        %1479 = vmatprep.subr.mxu0 0.0
        %1480 = vmatpush1.msra.mxu0 0.0
        %1481 = vmatprep.subr.mxu0 0.0
        %1482 = vmatpush1.msra.mxu0 0.0
        %1483 = vmatprep.subr.mxu0 0.0
        %1484 = vmatpush1.msra.mxu0 0.0
        %1485 = vmatprep.subr.mxu0 0.0
        %1486 = vmatpush1.msra.mxu0 0.0
        %1487 = vmatprep.subr.mxu0 0.0
        %1488 = vmatpush1.msra.mxu0 0.0
        %1489 = vmatprep.subr.mxu0 0.0
        %1490 = vmatpush1.msra.mxu0 0.0
        %1491 = vmatprep.subr.mxu0 0.0
        %1492 = vmatpush1.msra.mxu0 0.0
        %1493 = vmatprep.subr.mxu0 0.0
        %1494 = vmatpush1.msra.mxu0 0.0
        %1495 = vmatprep.subr.mxu0 0.0
        %1496 = vmatpush1.msra.mxu0 0.0
        %1497 = vmatprep.subr.mxu0 0.0
        %1498 = vmatpush1.msra.mxu0 0.0
        %1499 = vmatprep.subr.mxu0 0.0
        %1500 = vmatpush1.msra.mxu0 0.0
        %1501 = vmatprep.subr.mxu0 0.0
        %1502 = vmatpush1.msra.mxu0 0.0
        %1503 = vmatprep.subr.mxu0 0.0
        %1504 = vmatpush1.msra.mxu0 0.0
        %1505 = vmatprep.mubr.f32.mxu0 0.0
        %v1506 = vand.u32 %v1261, 4294901760
        %v1507 = vsub.f32 %v1261, %v1506
        %1508 = vmatmul.mubr.f32.gmra.mrb[0].mxu0 %v1507
        %v1509 = vpop.f32.mrb[0].mxu0
        %v1510 = vadd.f32 %v1430, %v1509
        %v1511 = vpop.f32.mrb[0].mxu0
        %1512 = vdwg.mxu0
        %1513 = vmatprep.subr.mxu0 0.0
        %v1514 = vand.u32 %v1239, 4294901760
        %1515 = vmatpush1.msra.mxu0 %v1514
        %1516 = vmatprep.subr.mxu0 0.0
        %v1517 = vand.u32 %v1240, 4294901760
        %1518 = vmatpush1.msra.mxu0 %v1517
        %1519 = vmatprep.subr.mxu0 0.0
        %v1520 = vand.u32 %v1241, 4294901760
        %1521 = vmatpush1.msra.mxu0 %v1520
        %1522 = vmatprep.subr.mxu0 0.0
        %v1523 = vand.u32 %v1242, 4294901760
        %1524 = vmatpush1.msra.mxu0 %v1523
        %1525 = vmatprep.subr.mxu0 0.0
        %1526 = vmatpush1.msra.mxu0 0.0
        %1527 = vmatprep.subr.mxu0 0.0
        %1528 = vmatpush1.msra.mxu0 0.0
        %1529 = vmatprep.subr.mxu0 0.0
        %1530 = vmatpush1.msra.mxu0 0.0
        %1531 = vmatprep.subr.mxu0 0.0
        %1532 = vmatpush1.msra.mxu0 0.0
        %1533 = vmatprep.subr.mxu0 0.0
        %1534 = vmatpush1.msra.mxu0 0.0
        %1535 = vmatprep.subr.mxu0 0.0
        %1536 = vmatpush1.msra.mxu0 0.0
        %1537 = vmatprep.subr.mxu0 0.0
        %1538 = vmatpush1.msra.mxu0 0.0
        %1539 = vmatprep.subr.mxu0 0.0
        %1540 = vmatpush1.msra.mxu0 0.0
        %1541 = vmatprep.subr.mxu0 0.0
        %1542 = vmatpush1.msra.mxu0 0.0
        %1543 = vmatprep.subr.mxu0 0.0
        %1544 = vmatpush1.msra.mxu0 0.0
        %1545 = vmatprep.subr.mxu0 0.0
        %1546 = vmatpush1.msra.mxu0 0.0
        %1547 = vmatprep.subr.mxu0 0.0
        %1548 = vmatpush1.msra.mxu0 0.0
        %1549 = vmatprep.subr.mxu0 0.0
        %1550 = vmatpush1.msra.mxu0 0.0
        %1551 = vmatprep.subr.mxu0 0.0
        %1552 = vmatpush1.msra.mxu0 0.0
        %1553 = vmatprep.subr.mxu0 0.0
        %1554 = vmatpush1.msra.mxu0 0.0
        %1555 = vmatprep.subr.mxu0 0.0
        %1556 = vmatpush1.msra.mxu0 0.0
        %1557 = vmatprep.subr.mxu0 0.0
        %1558 = vmatpush1.msra.mxu0 0.0
        %1559 = vmatprep.subr.mxu0 0.0
        %1560 = vmatpush1.msra.mxu0 0.0
        %1561 = vmatprep.subr.mxu0 0.0
        %1562 = vmatpush1.msra.mxu0 0.0
        %1563 = vmatprep.subr.mxu0 0.0
        %1564 = vmatpush1.msra.mxu0 0.0
        %1565 = vmatprep.subr.mxu0 0.0
        %1566 = vmatpush1.msra.mxu0 0.0
        %1567 = vmatprep.subr.mxu0 0.0
        %1568 = vmatpush1.msra.mxu0 0.0
        %1569 = vmatprep.subr.mxu0 0.0
        %1570 = vmatpush1.msra.mxu0 0.0
        %1571 = vmatprep.subr.mxu0 0.0
        %1572 = vmatpush1.msra.mxu0 0.0
        %1573 = vmatprep.subr.mxu0 0.0
        %1574 = vmatpush1.msra.mxu0 0.0
        %1575 = vmatprep.subr.mxu0 0.0
        %1576 = vmatpush1.msra.mxu0 0.0
        %1577 = vmatprep.subr.mxu0 0.0
        %1578 = vmatpush1.msra.mxu0 0.0
        %1579 = vmatprep.subr.mxu0 0.0
        %1580 = vmatpush1.msra.mxu0 0.0
        %1581 = vmatprep.mubr.f32.mxu0 0.0
        %v1582 = vand.u32 %v1261, 4294901760
        %v1583 = vsub.f32 %v1261, %v1582
        %v1584 = vand.u32 %v1583, 4294901760
        %1585 = vmatmul.mubr.f32.gmra.mrb[0].mxu0 %v1584
        %v1586 = vpop.f32.mrb[0].mxu0
        %v1587 = vadd.f32 %v1510, %v1586
        %v1588 = vpop.f32.mrb[0].mxu0
        %1589 = vdwg.mxu0
        %1590 = vmatprep.subr.mxu0 0.0
        %v1591 = vand.u32 %v1239, 4294901760
        %v1592 = vsub.f32 %v1239, %v1591
        %v1593 = vand.u32 %v1592, 4294901760
        %1594 = vmatpush1.msra.mxu0 %v1593
        %1595 = vmatprep.subr.mxu0 0.0
        %v1596 = vand.u32 %v1240, 4294901760
        %v1597 = vsub.f32 %v1240, %v1596
        %v1598 = vand.u32 %v1597, 4294901760
        %1599 = vmatpush1.msra.mxu0 %v1598
        %1600 = vmatprep.subr.mxu0 0.0
        %v1601 = vand.u32 %v1241, 4294901760
        %v1602 = vsub.f32 %v1241, %v1601
        %v1603 = vand.u32 %v1602, 4294901760
        %1604 = vmatpush1.msra.mxu0 %v1603
        %1605 = vmatprep.subr.mxu0 0.0
        %v1606 = vand.u32 %v1242, 4294901760
        %v1607 = vsub.f32 %v1242, %v1606
        %v1608 = vand.u32 %v1607, 4294901760
        %1609 = vmatpush1.msra.mxu0 %v1608
        %1610 = vmatprep.subr.mxu0 0.0
        %1611 = vmatpush1.msra.mxu0 0.0
        %1612 = vmatprep.subr.mxu0 0.0
        %1613 = vmatpush1.msra.mxu0 0.0
        %1614 = vmatprep.subr.mxu0 0.0
        %1615 = vmatpush1.msra.mxu0 0.0
        %1616 = vmatprep.subr.mxu0 0.0
        %1617 = vmatpush1.msra.mxu0 0.0
        %1618 = vmatprep.subr.mxu0 0.0
        %1619 = vmatpush1.msra.mxu0 0.0
        %1620 = vmatprep.subr.mxu0 0.0
        %1621 = vmatpush1.msra.mxu0 0.0
        %1622 = vmatprep.subr.mxu0 0.0
        %1623 = vmatpush1.msra.mxu0 0.0
        %1624 = vmatprep.subr.mxu0 0.0
        %1625 = vmatpush1.msra.mxu0 0.0
        %1626 = vmatprep.subr.mxu0 0.0
        %1627 = vmatpush1.msra.mxu0 0.0
        %1628 = vmatprep.subr.mxu0 0.0
        %1629 = vmatpush1.msra.mxu0 0.0
        %1630 = vmatprep.subr.mxu0 0.0
        %1631 = vmatpush1.msra.mxu0 0.0
        %1632 = vmatprep.subr.mxu0 0.0
        %1633 = vmatpush1.msra.mxu0 0.0
        %1634 = vmatprep.subr.mxu0 0.0
        %1635 = vmatpush1.msra.mxu0 0.0
        %1636 = vmatprep.subr.mxu0 0.0
        %1637 = vmatpush1.msra.mxu0 0.0
        %1638 = vmatprep.subr.mxu0 0.0
        %1639 = vmatpush1.msra.mxu0 0.0
        %1640 = vmatprep.subr.mxu0 0.0
        %1641 = vmatpush1.msra.mxu0 0.0
        %1642 = vmatprep.subr.mxu0 0.0
        %1643 = vmatpush1.msra.mxu0 0.0
        %1644 = vmatprep.subr.mxu0 0.0
        %1645 = vmatpush1.msra.mxu0 0.0
        %1646 = vmatprep.subr.mxu0 0.0
        %1647 = vmatpush1.msra.mxu0 0.0
        %1648 = vmatprep.subr.mxu0 0.0
        %1649 = vmatpush1.msra.mxu0 0.0
        %1650 = vmatprep.subr.mxu0 0.0
        %1651 = vmatpush1.msra.mxu0 0.0
        %1652 = vmatprep.subr.mxu0 0.0
        %1653 = vmatpush1.msra.mxu0 0.0
        %1654 = vmatprep.subr.mxu0 0.0
        %1655 = vmatpush1.msra.mxu0 0.0
        %1656 = vmatprep.subr.mxu0 0.0
        %1657 = vmatpush1.msra.mxu0 0.0
        %1658 = vmatprep.subr.mxu0 0.0
        %1659 = vmatpush1.msra.mxu0 0.0
        %1660 = vmatprep.subr.mxu0 0.0
        %1661 = vmatpush1.msra.mxu0 0.0
        %1662 = vmatprep.subr.mxu0 0.0
        %1663 = vmatpush1.msra.mxu0 0.0
        %1664 = vmatprep.subr.mxu0 0.0
        %1665 = vmatpush1.msra.mxu0 0.0
        %1666 = vmatprep.mubr.f32.mxu0 0.0
        %v1667 = vand.u32 %v1261, 4294901760
        %1668 = vmatmul.mubr.f32.gmra.mrb[0].mxu0 %v1667
        %v1669 = vpop.f32.mrb[0].mxu0
        %v1670 = vadd.f32 %v1587, %v1669
        %v1671 = vpop.f32.mrb[0].mxu0
        %1672 = vdwg.mxu0
        %1673 = vmatprep.subr.mxu0 0.0
        %v1674 = vand.u32 %v1239, 4294901760
        %1675 = vmatpush1.msra.mxu0 %v1674
        %1676 = vmatprep.subr.mxu0 0.0
        %v1677 = vand.u32 %v1240, 4294901760
        %1678 = vmatpush1.msra.mxu0 %v1677
        %1679 = vmatprep.subr.mxu0 0.0
        %v1680 = vand.u32 %v1241, 4294901760
        %1681 = vmatpush1.msra.mxu0 %v1680
        %1682 = vmatprep.subr.mxu0 0.0
        %v1683 = vand.u32 %v1242, 4294901760
        %1684 = vmatpush1.msra.mxu0 %v1683
        %1685 = vmatprep.subr.mxu0 0.0
        %1686 = vmatpush1.msra.mxu0 0.0
        %1687 = vmatprep.subr.mxu0 0.0
        %1688 = vmatpush1.msra.mxu0 0.0
        %1689 = vmatprep.subr.mxu0 0.0
        %1690 = vmatpush1.msra.mxu0 0.0
        %1691 = vmatprep.subr.mxu0 0.0
        %1692 = vmatpush1.msra.mxu0 0.0
        %1693 = vmatprep.subr.mxu0 0.0
        %1694 = vmatpush1.msra.mxu0 0.0
        %1695 = vmatprep.subr.mxu0 0.0
        %1696 = vmatpush1.msra.mxu0 0.0
        %1697 = vmatprep.subr.mxu0 0.0
        %1698 = vmatpush1.msra.mxu0 0.0
        %1699 = vmatprep.subr.mxu0 0.0
        %1700 = vmatpush1.msra.mxu0 0.0
        %1701 = vmatprep.subr.mxu0 0.0
        %1702 = vmatpush1.msra.mxu0 0.0
        %1703 = vmatprep.subr.mxu0 0.0
        %1704 = vmatpush1.msra.mxu0 0.0
        %1705 = vmatprep.subr.mxu0 0.0
        %1706 = vmatpush1.msra.mxu0 0.0
        %1707 = vmatprep.subr.mxu0 0.0
        %1708 = vmatpush1.msra.mxu0 0.0
        %1709 = vmatprep.subr.mxu0 0.0
        %1710 = vmatpush1.msra.mxu0 0.0
        %1711 = vmatprep.subr.mxu0 0.0
        %1712 = vmatpush1.msra.mxu0 0.0
        %1713 = vmatprep.subr.mxu0 0.0
        %1714 = vmatpush1.msra.mxu0 0.0
        %1715 = vmatprep.subr.mxu0 0.0
        %1716 = vmatpush1.msra.mxu0 0.0
        %1717 = vmatprep.subr.mxu0 0.0
        %1718 = vmatpush1.msra.mxu0 0.0
        %1719 = vmatprep.subr.mxu0 0.0
        %1720 = vmatpush1.msra.mxu0 0.0
        %1721 = vmatprep.subr.mxu0 0.0
        %1722 = vmatpush1.msra.mxu0 0.0
        %1723 = vmatprep.subr.mxu0 0.0
        %1724 = vmatpush1.msra.mxu0 0.0
        %1725 = vmatprep.subr.mxu0 0.0
        %1726 = vmatpush1.msra.mxu0 0.0
        %1727 = vmatprep.subr.mxu0 0.0
        %1728 = vmatpush1.msra.mxu0 0.0
        %1729 = vmatprep.subr.mxu0 0.0
        %1730 = vmatpush1.msra.mxu0 0.0
        %1731 = vmatprep.subr.mxu0 0.0
        %1732 = vmatpush1.msra.mxu0 0.0
        %1733 = vmatprep.subr.mxu0 0.0
        %1734 = vmatpush1.msra.mxu0 0.0
        %1735 = vmatprep.subr.mxu0 0.0
        %1736 = vmatpush1.msra.mxu0 0.0
        %1737 = vmatprep.subr.mxu0 0.0
        %1738 = vmatpush1.msra.mxu0 0.0
        %1739 = vmatprep.subr.mxu0 0.0
        %1740 = vmatpush1.msra.mxu0 0.0
        %1741 = vmatprep.mubr.f32.mxu0 0.0
        %v1742 = vand.u32 %v1261, 4294901760
        %1743 = vmatmul.mubr.f32.gmra.mrb[0].mxu0 %v1742
        %v1744 = vpop.f32.mrb[0].mxu0
        %v1745 = vadd.f32 %v1670, %v1744
        %v1746 = vpop.f32.mrb[0].mxu0
        %1747 = vdwg.mxu0
        %v1748 = vtanh.pop %v1745
        %1749 = vst.msk [vmem:[%s232] sm:$0xff] %vm266, %v1748
        %v1750 = vlaneseq
        %v1751 = vshrl.u32 %v1750, 7
        %v1752 = vsub.s32 %v886, %v1751
        %v1753 = vrot.slane %v1138, %v1752
        %v1754 = vlaneseq
        %v1755 = vshrl.u32 %v1754, 7
        %v1756 = vsub.s32 %v886, %v1755
        %v1757 = vrot.slane %v1143, %v1756
        %v1758 = vlaneseq
        %v1759 = vshrl.u32 %v1758, 7
        %v1760 = vsub.s32 %v886, %v1759
        %v1761 = vrot.slane %v1148, %v1760
        %v1762 = vlaneseq
        %v1763 = vshrl.u32 %v1762, 7
        %v1764 = vsub.s32 %v886, %v1763
        %v1765 = vrot.slane %v1153, %v1764
        %v1766 = vlaneseq
        %v1767 = vshrl.u32 %v1766, 7
        %v1768 = vsub.s32 %v886, %v1767
        %v1769 = vrot.slane %v1158, %v1768
        %v1770 = vlaneseq
        %v1771 = vshrl.u32 %v1770, 7
        %v1772 = vsub.s32 %v886, %v1771
        %v1773 = vrot.slane %v1163, %v1772
        %v1774 = vlaneseq
        %v1775 = vshrl.u32 %v1774, 7
        %v1776 = vsub.s32 %v886, %v1775
        %v1777 = vrot.slane %v1168, %v1776
        %v1778 = vlaneseq
        %v1779 = vshrl.u32 %v1778, 7
        %v1780 = vsub.s32 %v886, %v1779
        %v1781 = vrot.slane %v1173, %v1780
        %v1782 = vsel %vm919, %v1757, %v1753
        %v1783 = vsel %vm921, %v1761, %v1782
        %v1784 = vsel %vm923, %v1765, %v1783
        %v1785 = vsel %vm925, %v1769, %v1784
        %v1786 = vsel %vm927, %v1773, %v1785
        %v1787 = vsel %vm929, %v1777, %v1786
        %v1788 = vsel %vm931, %v1781, %v1787
        %1790 = vst.msk [vmem:[%s252] sm:$0xff] %vm934, %v1788
        %s1791 = sand.u32 %s122, 1
        %s1792 = scalar_lea.sflag [#allocation3], %s1791
        %s1793 = sand.u32 %s122, 1
        %s1794 = smul.addr %s1793, 8
        %s1795 = scalar_lea.vmem [#allocation2], %s1794
        %p1796 = scmp.lt.s32.totalorder %s20, 3
        %s1797 = scalar_select %p1796, %s20, 3
        %s1798 = smul.addr %s1797, 8
        %s1799 = scalar_lea.vmem %s5, %s1798
        // Predicated region
        $region37: #{soft_dot_attention.1} parent=35 // pred_check
          %p1800 = pneg %p132
        $region38: #{soft_dot_attention.1} parent=35 // pred_check_branch
          %1802 = sbr.rel (%p1800) target = $region40
        $region39: #{soft_dot_attention.1} parent=35 // pred_region
          %s1804 = ssub.s32 128, 128
          %1805 = vsyncadd %s1792, %s1804
          %s1806 = smul.addr %s20, 128
          %s1807 = scalar_lea.hbm %s4, %s1806
          %s1809 = sshll.u32 %s1795, 4
          %s1810 = int_to_ptr.vmem [resolvable:$true] %s1809
          %1812 = dma.vmem_to_hbm [thread:$0]  %s1810, 128, %s1807, %s1792
        $region40: #{soft_dot_attention.1} parent=35 // pred_fallthru
          _
        // Predicated region
        $region41: #{soft_dot_attention.1} parent=35 // pred_check
          %p1813 = pneg %p158
        $region42: #{soft_dot_attention.1} parent=35 // pred_check_branch
          %1815 = sbr.rel (%p1813) target = $region44
        $region43: #{soft_dot_attention.1} parent=35 // pred_region
          _
        $region44: #{soft_dot_attention.1} parent=35 // pred_fallthru
          _
      $region36: #{soft_dot_attention.1} parent=5 // pred_fallthru
        _
      %p1816 = scmp.le.s32.totalorder 2, %s15
      // Predicated region
      $region45: #{soft_dot_attention.1} parent=5 // pred_check
        %p1817 = pneg %p1816
      $region46: #{soft_dot_attention.1} parent=5 // pred_check_branch
        %1819 = sbr.rel (%p1817) target = $region48
      $region47: #{soft_dot_attention.1} parent=5 // pred_region
        %s1820 = ssub.s32 %s15, 2
        // Predicated region
        $region49: #{soft_dot_attention.1} parent=47 // pred_check
          %p1821 = pneg %p138
        $region50: #{soft_dot_attention.1} parent=47 // pred_check_branch
          %1823 = sbr.rel (%p1821) target = $region52
        $region51: #{soft_dot_attention.1} parent=47 // pred_region
          %s1824 = sand.u32 %s123, 1
          %s1825 = scalar_lea.sflag [#allocation3], %s1824
          %s1826 = sand.u32 %s123, 1
          %s1827 = smul.addr %s1826, 8
          %s1828 = scalar_lea.vmem [#allocation2], %s1827
          %1829 = dma.done %s1825, 128
        $region52: #{soft_dot_attention.1} parent=47 // pred_fallthru
          _
        // Predicated region
        $region53: #{soft_dot_attention.1} parent=47 // pred_check
          %p1830 = pneg %p164
        $region54: #{soft_dot_attention.1} parent=47 // pred_check_branch
          %1832 = sbr.rel (%p1830) target = $region56
        $region55: #{soft_dot_attention.1} parent=47 // pred_region
          %p1833 = scmp.lt.s32.totalorder %s21, 3
          %s1834 = scalar_select %p1833, %s21, 3
          %s1835 = smul.addr %s1834, 8
          %s1836 = scalar_lea.vmem %s5, %s1835
        $region56: #{soft_dot_attention.1} parent=47 // pred_fallthru
          _
      $region48: #{soft_dot_attention.1} parent=5 // pred_fallthru
        _
    $region6: #{soft_dot_attention.1} parent=1 // loop_footer
      %s19 = sadd.s32 1, %s15
    $region7: #{soft_dot_attention.1} parent=1 // loop_footer_branch
      %14 = sbr.rel target = $region3
    $region8: #{soft_dot_attention.1} parent=1 // loop_exit
      _
    %1837 = vsyncpa [#allocation3], 1
    %s1838 = scalar_lea.sflag [#allocation3], 1
    %1839 = vsyncpa %s1838, 1

</llo_original>
